<compile_context>
chip_gen: v7x
topology: tpu7x:2x2x1
jax: 0.10.0
libtpu: 0.0.40
codegen_flags: <defaults>
</compile_context>

<pallas_src>
from functools import partial

import jax
import jax.numpy as jnp
from jax.experimental import pallas as pl
from jax.experimental.pallas import tpu as pltpu


def _round_up(x, m):
    return (x + m - 1) // m * m


def _deconv_tile(xa_ref, xb_ref, w_ref, *, K, Wp, TM):
    """One (Cout, TM) conv tile: im2col slab in VMEM + a single MXU GEMM.

    xa_ref: (1, Cin, TM)    bf16  flattened-input tile t
    xb_ref: (1, Cin, HALO)  bf16  trailing halo (covers max tap shift)
    w_ref:  (Cout, K*K*Cin) bf16  transposed im2col weight
    """
    x_cat = jnp.concatenate([xa_ref[0], xb_ref[0]], axis=-1)   # (Cin, TM+HALO)

    # Slab row order (kh, kw, ci) matches the columns of w_ref.
    cols = []
    for kh in range(K):
        for kw in range(K):
            s = kh * Wp + kw                    # static flat shift of this tap
            cols.append(x_cat[:, s:s + TM])     # (Cin, TM) lane-shifted slice
    x2 = jnp.concatenate(cols, axis=0)          # (K*K*Cin, TM)

    # bf16 operands, f32 accumulation, default precision.
    return jax.lax.dot_general(
        w_ref[...], x2,
        dimension_numbers=(((1,), (0,)), ((), ())),
        preferred_element_type=jnp.float32)     # (Cout, TM)


def stats_kernel(xa_ref, xb_ref, w_ref, stats_ref, *, K, Wp, Wo, Lo, TM):
    """Phase 1: per-channel [sum, sumsq] of the conv output, accumulated across
    the tile axis in the resident output block (no conv output is written)."""
    t = pl.program_id(1)

    @pl.when(t == 0)
    def _():
        stats_ref[...] = jnp.zeros_like(stats_ref)

    y = _deconv_tile(xa_ref, xb_ref, w_ref, K=K, Wp=Wp, TM=TM)

    # Mask columns that are not real output pixels (right-edge wrap of the
    # flattened rows + trailing flat zero padding).
    col = jax.lax.broadcasted_iota(jnp.int32, (1, TM), 1) + t * TM
    valid = jnp.logical_and(col < Lo, col % Wp < Wo).astype(jnp.float32)
    yv = y * valid
    s1 = jnp.sum(yv, axis=-1, keepdims=True)        # (Cout, 1)  sum
    s2 = jnp.sum(yv * y, axis=-1, keepdims=True)    # (Cout, 1)  sum of squares
    stats_ref[0] += jnp.concatenate([s1, s2], axis=-1)


def conv_bn_relu_kernel(xa_ref, xb_ref, w_ref, scale_ref, shift_ref, o_ref, *,
                        K, Wp, TM):
    """Phase 2: recompute the conv tile, apply y*scale + shift, ReLU, and write
    the final flat output directly (lane-dense f32 stores)."""
    y = _deconv_tile(xa_ref, xb_ref, w_ref, K=K, Wp=Wp, TM=TM)
    o_ref[0] = jnp.maximum(y * scale_ref[...] + shift_ref[...], 0.0)


def dnr_forward(x_nchw, w_t, gamma, beta, *, kernel_size=4, stride=1,
                padding=1, output_padding=0, eps=1e-5, tile_m=1024):
    """DNR forward.  x_nchw: (N, Cin, H, W).  w_t: ConvTranspose2d weight
    (Cin, Cout, K, K).  gamma/beta: (Cout,).  Returns (N, Cout, Ho, Wo) f32."""
    # TODO(synk): stride > 1 / output_padding > 0 (input-dilated deconv) not
    # implemented; module defaults are stride=1, output_padding=0.
    assert stride == 1 and output_padding == 0
    N, Cin, H, W = x_nchw.shape
    Cin_w, Cout, K, K2 = w_t.shape
    assert Cin == Cin_w and K == K2 == kernel_size

    pad = K - 1 - padding                       # equivalent-conv padding
    Hp, Wp = H + 2 * pad, W + 2 * pad
    Ho, Wo = Hp - K + 1, Wp - K + 1             # deconv output size (= H+1 here)

    Lo = Ho * Wp                                # un-cropped flat output length
    max_off = (K - 1) * Wp + (K - 1)            # largest im2col tap shift
    HALO = _round_up(max_off, 128)              # lane-aligned halo width
    # Tile: multiple of HALO (so the halo index_map is exact), capped to the
    # problem size, default ~1024 lanes (good HBM-roofline point; also a safe
    # cap for v7x's smaller VMEM at these channel counts).
    TM = _round_up(min(max(tile_m, HALO), _round_up(Lo, HALO)), HALO)
    T = pl.cdiv(Lo, TM)
    Lp = T * TM + HALO                          # flat input length incl. halo
    Kc = K * K * Cin

    # ---- XLA-side glue: cast to bf16 FIRST, then zero-pad + flatten.  No
    # layout transposes; kernels consume/produce the NCHW(-flattened) layout.
    x_pad = jnp.pad(x_nchw.astype(jnp.bfloat16),
                    ((0, 0), (0, 0), (pad, pad), (pad, pad)))
    x_flat = x_pad.reshape(N, Cin, Hp * Wp)
    x_flat = jnp.pad(x_flat, ((0, 0), (0, 0), (0, Lp - Hp * Wp)))

    # ConvTranspose(stride=1) == conv with spatially flipped kernel, io swapped.
    w_conv = jnp.transpose(jnp.flip(w_t, axis=(2, 3)), (2, 3, 0, 1))  # (K,K,Cin,Cout)
    w2t = w_conv.reshape(Kc, Cout).T.astype(jnp.bfloat16)             # (Cout, Kc)

    # Shared block specs.
    halo_blocks = TM // HALO
    x_spec = pl.BlockSpec((1, Cin, TM), lambda n, t: (n, 0, t))
    halo_spec = pl.BlockSpec((1, Cin, HALO),
                             lambda n, t: (n, 0, (t + 1) * halo_blocks))
    w_spec = pl.BlockSpec((Cout, Kc), lambda n, t: (0, 0))

    # Per-step VMEM estimate; only raise the scoped limit when actually needed
    # (keeps the default 32 MiB — safe on v7x's 64 MiB physical — otherwise).
    vmem_est = (2 * Cin * (TM + HALO) * 2       # double-buffered bf16 inputs
                + Cout * Kc * 2                 # resident weight
                + Kc * TM * 2                   # im2col slab
                + Cin * (TM + HALO) * 2         # x_cat temporary
                + 3 * Cout * TM * 4)            # f32 conv tile + dbuf output
    vmem_limit = None
    if vmem_est > 24 * 1024 * 1024:
        vmem_limit = min(int(vmem_est * 2), 64 * 1024 * 1024)

    # ---- Phase 1: BN statistics only (accumulated across t in the resident
    # output block; written once per image).
    kern1 = partial(stats_kernel, K=K, Wp=Wp, Wo=Wo, Lo=Lo, TM=TM)
    flops1 = 2 * N * T * Cout * Kc * TM
    bytes1 = (N * T * Cin * (TM + HALO) * 2 + Cout * Kc * 2 + N * Cout * 2 * 4)
    stats = pl.pallas_call(
        kern1,
        grid=(N, T),
        in_specs=[x_spec, halo_spec, w_spec],
        out_specs=pl.BlockSpec((1, Cout, 2), lambda n, t: (n, 0, 0)),
        out_shape=jax.ShapeDtypeStruct((N, Cout, 2), jnp.float32),
        compiler_params=pltpu.CompilerParams(
            dimension_semantics=("parallel", "arbitrary"),
            vmem_limit_bytes=vmem_limit),
        cost_estimate=pl.CostEstimate(flops=flops1, transcendentals=0,
                                      bytes_accessed=bytes1),
    )(x_flat, x_flat, w2t)

    # ---- Tiny reduction -> per-channel scale/shift (training-mode biased var).
    count = N * Ho * Wo
    s1 = jnp.sum(stats[..., 0], axis=0)                      # (Cout,)
    s2 = jnp.sum(stats[..., 1], axis=0)                      # (Cout,)
    mean = s1 / count
    var = jnp.maximum(s2 / count - mean * mean, 0.0)
    inv = jax.lax.rsqrt(var + eps)
    g = gamma.astype(jnp.float32)
    b = beta.astype(jnp.float32)
    scale = (g * inv).reshape(Cout, 1)
    shift = (b - mean * g * inv).reshape(Cout, 1)

    # ---- Phase 2: recompute conv + BN + ReLU straight into the final flat
    # output (no f32 intermediate is ever written to HBM).
    kern2 = partial(conv_bn_relu_kernel, K=K, Wp=Wp, TM=TM)
    flops2 = N * T * (2 * Cout * Kc * TM + 3 * Cout * TM)
    bytes2 = (N * T * Cin * (TM + HALO) * 2 + Cout * Kc * 2
              + 2 * Cout * 4 + N * T * Cout * TM * 4)
    out_flat = pl.pallas_call(
        kern2,
        grid=(N, T),
        in_specs=[x_spec, halo_spec, w_spec,
                  pl.BlockSpec((Cout, 1), lambda n, t: (0, 0)),
                  pl.BlockSpec((Cout, 1), lambda n, t: (0, 0))],
        out_specs=pl.BlockSpec((1, Cout, TM), lambda n, t: (n, 0, t)),
        out_shape=jax.ShapeDtypeStruct((N, Cout, T * TM), jnp.float32),
        compiler_params=pltpu.CompilerParams(
            dimension_semantics=("parallel", "parallel"),
            vmem_limit_bytes=vmem_limit),
        cost_estimate=pl.CostEstimate(flops=flops2, transcendentals=0,
                                      bytes_accessed=bytes2),
    )(x_flat, x_flat, w2t, scale, shift)

    # ---- Crop the flat (Ho, Wp) layout back to (Ho, Wo).  Already NCHW.
    out = out_flat[:, :, :Lo].reshape(N, Cout, Ho, Wp)[:, :, :, :Wo]
    return out


def dnr_reference(x_nchw, w_t, gamma, beta, *, padding=1, eps=1e-5):
    """Pure-JAX/XLA reference.  The conv uses bf16 operands with f32
    accumulation (matching the kernel's MXU precision); BN/ReLU in f32."""
    Cin, Cout, K, _ = w_t.shape
    w_oihw = jnp.transpose(jnp.flip(w_t, axis=(2, 3)), (1, 0, 2, 3))
    pad = K - 1 - padding
    y = jax.lax.conv_general_dilated(
        x_nchw.astype(jnp.bfloat16), w_oihw.astype(jnp.bfloat16),
        window_strides=(1, 1), padding=((pad, pad), (pad, pad)),
        dimension_numbers=("NCHW", "OIHW", "NCHW"),
        preferred_element_type=jnp.float32)
    mean = jnp.mean(y, axis=(0, 2, 3), keepdims=True)
    var = jnp.mean((y - mean) ** 2, axis=(0, 2, 3), keepdims=True)
    y = (y - mean) * jax.lax.rsqrt(var + eps)
    y = y * gamma.reshape(1, -1, 1, 1) + beta.reshape(1, -1, 1, 1)
    return jnp.maximum(y, 0.0)


if __name__ == "__main__":
    key = jax.random.PRNGKey(0)
    kx, kw, kg, kb = jax.random.split(key, 4)

    N, Cin, Cout, H, W, K = 2, 4, 8, 16, 16, 4

    x = jax.random.normal(kx, (N, Cin, H, W), dtype=jnp.float32)
    # ConvTranspose2d weight (Cin, Cout, K, K); BatchNorm2d affine params.
    w_t = 0.1 * jax.random.normal(kw, (Cin, Cout, K, K), dtype=jnp.float32)
    gamma = 1.0 + 0.1 * jax.random.normal(kg, (Cout,), dtype=jnp.float32)
    beta = 0.1 * jax.random.normal(kb, (Cout,), dtype=jnp.float32)

    fwd = jax.jit(partial(dnr_forward, kernel_size=K, stride=1, padding=1,
                          output_padding=0, eps=1e-5))
    out = jax.block_until_ready(fwd(x, w_t, gamma, beta))

    ref = jax.block_until_ready(dnr_reference(x, w_t, gamma, beta, padding=1))
    assert out.shape == (N, Cout, H + 1, W + 1), out.shape
    max_err = float(jnp.max(jnp.abs(out - ref)))
    assert jnp.allclose(out, ref, atol=1e-3, rtol=1e-3), max_err

    print("KERNEL_OK")
</pallas_src>

<mosaic_0001>
module attributes {stable_mosaic.version = 11 : i64} {
  func.func @stats_kernel(%arg0: i32, %arg1: i32, %arg2: memref<1x4x384xbf16, #tpu.memory_space<vmem>>, %arg3: memref<1x4x128xbf16, #tpu.memory_space<vmem>>, %arg4: memref<8x64xbf16, #tpu.memory_space<vmem>>, %arg5: memref<1x8x2xf32, #tpu.memory_space<vmem>>) attributes {dimension_semantics = [#tpu.dimension_semantics<parallel>, #tpu.dimension_semantics<arbitrary>], iteration_bounds = array<i64: 2, 1>, scalar_prefetch = 0 : i64, scratch_operands = 0 : i64, tpu.core_type = #tpu.core_type<tc>, window_params = [{transform_indices = @transform_0, window_bounds = array<i64: 1, 4, 384>}, {transform_indices = @transform_1, window_bounds = array<i64: 1, 4, 128>}, {pipeline_mode = #tpu.pipeline_mode<synchronous>, transform_indices = @transform_2, window_bounds = array<i64: 8, 64>}, {transform_indices = @transform_3, window_bounds = array<i64: 1, 8, 2>}]} {
    %c0_i32 = arith.constant 0 : i32
    %0 = arith.cmpi eq, %arg1, %c0_i32 : i32
    %1 = arith.extui %0 : i1 to i32
    %c0_i32_0 = arith.constant 0 : i32
    %2 = arith.cmpi ne, %1, %c0_i32_0 : i32
    scf.if %2 {
      %cst_20 = arith.constant 0.000000e+00 : f32
      %68 = vector.broadcast %cst_20 : f32 to vector<1x8x2xf32>
      %c0_21 = arith.constant 0 : index
      %c0_22 = arith.constant 0 : index
      %c0_23 = arith.constant 0 : index
      %69 = vector.load %arg5[%c0_21, %c0_22, %c0_23] : memref<1x8x2xf32, #tpu.memory_space<vmem>>, vector<1x8x2xf32>
      tpu.vector_store %arg5[%c0_21, %c0_22, %c0_23], %68 {strides = array<i32>} : memref<1x8x2xf32, #tpu.memory_space<vmem>>, vector<1x8x2xf32>,
    } else {
    }
    %c0 = arith.constant 0 : index
    %c0_1 = arith.constant 0 : index
    %c0_2 = arith.constant 0 : index
    %3 = vector.load %arg2[%c0, %c0_1, %c0_2] : memref<1x4x384xbf16, #tpu.memory_space<vmem>>, vector<1x4x384xbf16>
    %4 = vector.shape_cast %3 : vector<1x4x384xbf16> to vector<4x384xbf16>
    %c0_3 = arith.constant 0 : index
    %c0_4 = arith.constant 0 : index
    %c0_5 = arith.constant 0 : index
    %5 = vector.load %arg3[%c0_3, %c0_4, %c0_5] : memref<1x4x128xbf16, #tpu.memory_space<vmem>>, vector<1x4x128xbf16>
    %6 = vector.shape_cast %5 : vector<1x4x128xbf16> to vector<4x128xbf16>
    %7 = tpu.concatenate %4, %6 in 1 : vector<4x384xbf16>, vector<4x128xbf16> -> vector<4x512xbf16>
    %8 = vector.extract_strided_slice %7 {offsets = [0, 0], sizes = [4, 384], strides = [1, 1]} : vector<4x512xbf16> to vector<4x384xbf16>
    %9 = vector.extract_strided_slice %7 {offsets = [0, 1], sizes = [4, 384], strides = [1, 1]} : vector<4x512xbf16> to vector<4x384xbf16>
    %10 = vector.extract_strided_slice %7 {offsets = [0, 2], sizes = [4, 384], strides = [1, 1]} : vector<4x512xbf16> to vector<4x384xbf16>
    %11 = vector.extract_strided_slice %7 {offsets = [0, 3], sizes = [4, 384], strides = [1, 1]} : vector<4x512xbf16> to vector<4x384xbf16>
    %12 = vector.extract_strided_slice %7 {offsets = [0, 20], sizes = [4, 384], strides = [1, 1]} : vector<4x512xbf16> to vector<4x384xbf16>
    %13 = vector.extract_strided_slice %7 {offsets = [0, 21], sizes = [4, 384], strides = [1, 1]} : vector<4x512xbf16> to vector<4x384xbf16>
    %14 = vector.extract_strided_slice %7 {offsets = [0, 22], sizes = [4, 384], strides = [1, 1]} : vector<4x512xbf16> to vector<4x384xbf16>
    %15 = vector.extract_strided_slice %7 {offsets = [0, 23], sizes = [4, 384], strides = [1, 1]} : vector<4x512xbf16> to vector<4x384xbf16>
    %16 = vector.extract_strided_slice %7 {offsets = [0, 40], sizes = [4, 384], strides = [1, 1]} : vector<4x512xbf16> to vector<4x384xbf16>
    %17 = vector.extract_strided_slice %7 {offsets = [0, 41], sizes = [4, 384], strides = [1, 1]} : vector<4x512xbf16> to vector<4x384xbf16>
    %18 = vector.extract_strided_slice %7 {offsets = [0, 42], sizes = [4, 384], strides = [1, 1]} : vector<4x512xbf16> to vector<4x384xbf16>
    %19 = vector.extract_strided_slice %7 {offsets = [0, 43], sizes = [4, 384], strides = [1, 1]} : vector<4x512xbf16> to vector<4x384xbf16>
    %20 = vector.extract_strided_slice %7 {offsets = [0, 60], sizes = [4, 384], strides = [1, 1]} : vector<4x512xbf16> to vector<4x384xbf16>
    %21 = vector.extract_strided_slice %7 {offsets = [0, 61], sizes = [4, 384], strides = [1, 1]} : vector<4x512xbf16> to vector<4x384xbf16>
    %22 = vector.extract_strided_slice %7 {offsets = [0, 62], sizes = [4, 384], strides = [1, 1]} : vector<4x512xbf16> to vector<4x384xbf16>
    %23 = vector.extract_strided_slice %7 {offsets = [0, 63], sizes = [4, 384], strides = [1, 1]} : vector<4x512xbf16> to vector<4x384xbf16>
    %24 = tpu.concatenate %8, %9, %10, %11, %12, %13, %14, %15, %16, %17, %18, %19, %20, %21, %22, %23 in 0 : vector<4x384xbf16>, vector<4x384xbf16>, vector<4x384xbf16>, vector<4x384xbf16>, vector<4x384xbf16>, vector<4x384xbf16>, vector<4x384xbf16>, vector<4x384xbf16>, vector<4x384xbf16>, vector<4x384xbf16>, vector<4x384xbf16>, vector<4x384xbf16>, vector<4x384xbf16>, vector<4x384xbf16>, vector<4x384xbf16>, vector<4x384xbf16> -> vector<64x384xbf16>
    %c0_6 = arith.constant 0 : index
    %c0_7 = arith.constant 0 : index
    %25 = vector.load %arg4[%c0_6, %c0_7] : memref<8x64xbf16, #tpu.memory_space<vmem>>, vector<8x64xbf16>
    %cst = arith.constant dense<0.000000e+00> : vector<8x384xf32>
    %26 = tpu.matmul %25, %24, %cst {dimension_numbers = #tpu.dot_dimension_numbers<[1], [0], [0], [1], [0, 0, 1, 1], [], []>} : vector<8x64xbf16>, vector<64x384xbf16>, vector<8x384xf32> -> vector<8x384xf32>
    %27 = tpu.iota {dimensions = array<i32: 1>} : vector<1x384xi32>
    %c384_i32 = arith.constant 384 : i32
    %28 = arith.muli %arg1, %c384_i32 : i32
    %29 = vector.broadcast %28 : i32 to vector<1x384xi32>
    %30 = arith.addi %27, %29 : vector<1x384xi32>
    %c340_i32 = arith.constant 340 : i32
    %31 = vector.broadcast %c340_i32 : i32 to vector<1x384xi32>
    %32 = arith.cmpi slt, %30, %31 : vector<1x384xi32>
    %c20_i32 = arith.constant 20 : i32
    %c0_i32_8 = arith.constant 0 : i32
    %33 = arith.cmpi eq, %c20_i32, %c0_i32_8 : i32
    %c1_i32 = arith.constant 1 : i32
    %34 = arith.select %33, %c1_i32, %c20_i32 : i32
    %35 = vector.broadcast %34 : i32 to vector<1x384xi32>
    %36 = arith.remsi %30, %35 : vector<1x384xi32>
    %c0_i32_9 = arith.constant 0 : i32
    %37 = vector.broadcast %c0_i32_9 : i32 to vector<1x384xi32>
    %38 = arith.cmpi ne, %36, %37 : vector<1x384xi32>
    %c0_i32_10 = arith.constant 0 : i32
    %39 = vector.broadcast %c0_i32_10 : i32 to vector<1x384xi32>
    %40 = arith.cmpi slt, %36, %39 : vector<1x384xi32>
    %c0_i32_11 = arith.constant 0 : i32
    %41 = arith.cmpi slt, %34, %c0_i32_11 : i32
    %42 = vector.broadcast %41 : i1 to vector<1x384xi1>
    %43 = vector.broadcast %42 : vector<1x384xi1> to vector<1x384xi1>
    %44 = arith.xori %40, %43 : vector<1x384xi1>
    %45 = arith.andi %44, %38 : vector<1x384xi1>
    %46 = vector.broadcast %34 : i32 to vector<1x384xi32>
    %47 = arith.addi %36, %46 : vector<1x384xi32>
    %48 = arith.select %45, %47, %36 : vector<1x384xi1>, vector<1x384xi32>
    %c17_i32 = arith.constant 17 : i32
    %49 = vector.broadcast %c17_i32 : i32 to vector<1x384xi32>
    %50 = arith.cmpi slt, %48, %49 : vector<1x384xi32>
    %51 = arith.andi %32, %50 : vector<1x384xi1>
    %52 = arith.extui %51 : vector<1x384xi1> to vector<1x384xi32>
    %53 = arith.sitofp %52 : vector<1x384xi32> to vector<1x384xf32>
    %54 = vector.broadcast %53 : vector<1x384xf32> to vector<8x384xf32>
    %55 = arith.mulf %26, %54 : vector<8x384xf32>
    %cst_12 = arith.constant dense<0.000000e+00> : vector<8xf32>
    %56 = vector.multi_reduction <add>, %55, %cst_12 [1] : vector<8x384xf32> to vector<8xf32>
    %57 = vector.shape_cast %56 : vector<8xf32> to vector<8x1xf32>
    %58 = arith.mulf %55, %26 : vector<8x384xf32>
    %cst_13 = arith.constant dense<0.000000e+00> : vector<8xf32>
    %59 = vector.multi_reduction <add>, %58, %cst_13 [1] : vector<8x384xf32> to vector<8xf32>
    %60 = vector.shape_cast %59 : vector<8xf32> to vector<8x1xf32>
    %c0_14 = arith.constant 0 : index
    %c0_15 = arith.constant 0 : index
    %c0_16 = arith.constant 0 : index
    %61 = vector.load %arg5[%c0_14, %c0_15, %c0_16] : memref<1x8x2xf32, #tpu.memory_space<vmem>>, vector<1x8x2xf32>
    %62 = vector.shape_cast %61 : vector<1x8x2xf32> to vector<8x2xf32>
    %63 = tpu.concatenate %57, %60 in 1 : vector<8x1xf32>, vector<8x1xf32> -> vector<8x2xf32>
    %64 = arith.addf %62, %63 : vector<8x2xf32>
    %c0_17 = arith.constant 0 : index
    %c0_18 = arith.constant 0 : index
    %c0_19 = arith.constant 0 : index
    %65 = vector.load %arg5[%c0_17, %c0_18, %c0_19] : memref<1x8x2xf32, #tpu.memory_space<vmem>>, vector<1x8x2xf32>
    %66 = vector.shape_cast %65 : vector<1x8x2xf32> to vector<8x2xf32>
    %67 = vector.shape_cast %64 : vector<8x2xf32> to vector<1x8x2xf32>
    tpu.vector_store %arg5[%c0_17, %c0_18, %c0_19], %67 {strides = array<i32>} : memref<1x8x2xf32, #tpu.memory_space<vmem>>, vector<1x8x2xf32>,
    return
  }
  func.func @transform_0(%arg0: i32, %arg1: i32) -> (i32, i32, i32) {
    %c0_i32 = arith.constant 0 : i32
    %c0_i32_0 = arith.constant 0 : i32
    return %arg0, %c0_i32, %arg1 : i32, i32, i32
  }
  func.func @transform_1(%arg0: i32, %arg1: i32) -> (i32, i32, i32) {
    %c1_i32 = arith.constant 1 : i32
    %0 = arith.addi %arg1, %c1_i32 : i32
    %c3_i32 = arith.constant 3 : i32
    %1 = arith.muli %0, %c3_i32 : i32
    %c0_i32 = arith.constant 0 : i32
    %c0_i32_0 = arith.constant 0 : i32
    return %arg0, %c0_i32, %1 : i32, i32, i32
  }
  func.func @transform_2(%arg0: i32, %arg1: i32) -> (i32, i32) {
    %c0_i32 = arith.constant 0 : i32
    %c0_i32_0 = arith.constant 0 : i32
    %c0_i32_1 = arith.constant 0 : i32
    return %c0_i32, %c0_i32_0 : i32, i32
  }
  func.func @transform_3(%arg0: i32, %arg1: i32) -> (i32, i32, i32) {
    %c0_i32 = arith.constant 0 : i32
    %c0_i32_0 = arith.constant 0 : i32
    %c0_i32_1 = arith.constant 0 : i32
    return %arg0, %c0_i32, %c0_i32_0 : i32, i32, i32
  }
}

module attributes {stable_mosaic.version = 11 : i64} {
  func.func @conv_bn_relu_kernel(%arg0: i32, %arg1: i32, %arg2: memref<1x4x384xbf16, #tpu.memory_space<vmem>>, %arg3: memref<1x4x128xbf16, #tpu.memory_space<vmem>>, %arg4: memref<8x64xbf16, #tpu.memory_space<vmem>>, %arg5: memref<8x1xf32, #tpu.memory_space<vmem>>, %arg6: memref<8x1xf32, #tpu.memory_space<vmem>>, %arg7: memref<1x8x384xf32, #tpu.memory_space<vmem>>) attributes {dimension_semantics = [#tpu.dimension_semantics<parallel>, #tpu.dimension_semantics<parallel>], iteration_bounds = array<i64: 2, 1>, scalar_prefetch = 0 : i64, scratch_operands = 0 : i64, tpu.core_type = #tpu.core_type<tc>, window_params = [{transform_indices = @transform_0, window_bounds = array<i64: 1, 4, 384>}, {transform_indices = @transform_1, window_bounds = array<i64: 1, 4, 128>}, {pipeline_mode = #tpu.pipeline_mode<synchronous>, transform_indices = @transform_2, window_bounds = array<i64: 8, 64>}, {pipeline_mode = #tpu.pipeline_mode<synchronous>, transform_indices = @transform_3, window_bounds = array<i64: 8, 1>}, {pipeline_mode = #tpu.pipeline_mode<synchronous>, transform_indices = @transform_4, window_bounds = array<i64: 8, 1>}, {transform_indices = @transform_5, window_bounds = array<i64: 1, 8, 384>}]} {
    %c0 = arith.constant 0 : index
    %c0_0 = arith.constant 0 : index
    %c0_1 = arith.constant 0 : index
    %0 = vector.load %arg2[%c0, %c0_0, %c0_1] : memref<1x4x384xbf16, #tpu.memory_space<vmem>>, vector<1x4x384xbf16>
    %1 = vector.shape_cast %0 : vector<1x4x384xbf16> to vector<4x384xbf16>
    %c0_2 = arith.constant 0 : index
    %c0_3 = arith.constant 0 : index
    %c0_4 = arith.constant 0 : index
    %2 = vector.load %arg3[%c0_2, %c0_3, %c0_4] : memref<1x4x128xbf16, #tpu.memory_space<vmem>>, vector<1x4x128xbf16>
    %3 = vector.shape_cast %2 : vector<1x4x128xbf16> to vector<4x128xbf16>
    %4 = tpu.concatenate %1, %3 in 1 : vector<4x384xbf16>, vector<4x128xbf16> -> vector<4x512xbf16>
    %5 = vector.extract_strided_slice %4 {offsets = [0, 0], sizes = [4, 384], strides = [1, 1]} : vector<4x512xbf16> to vector<4x384xbf16>
    %6 = vector.extract_strided_slice %4 {offsets = [0, 1], sizes = [4, 384], strides = [1, 1]} : vector<4x512xbf16> to vector<4x384xbf16>
    %7 = vector.extract_strided_slice %4 {offsets = [0, 2], sizes = [4, 384], strides = [1, 1]} : vector<4x512xbf16> to vector<4x384xbf16>
    %8 = vector.extract_strided_slice %4 {offsets = [0, 3], sizes = [4, 384], strides = [1, 1]} : vector<4x512xbf16> to vector<4x384xbf16>
    %9 = vector.extract_strided_slice %4 {offsets = [0, 20], sizes = [4, 384], strides = [1, 1]} : vector<4x512xbf16> to vector<4x384xbf16>
    %10 = vector.extract_strided_slice %4 {offsets = [0, 21], sizes = [4, 384], strides = [1, 1]} : vector<4x512xbf16> to vector<4x384xbf16>
    %11 = vector.extract_strided_slice %4 {offsets = [0, 22], sizes = [4, 384], strides = [1, 1]} : vector<4x512xbf16> to vector<4x384xbf16>
    %12 = vector.extract_strided_slice %4 {offsets = [0, 23], sizes = [4, 384], strides = [1, 1]} : vector<4x512xbf16> to vector<4x384xbf16>
    %13 = vector.extract_strided_slice %4 {offsets = [0, 40], sizes = [4, 384], strides = [1, 1]} : vector<4x512xbf16> to vector<4x384xbf16>
    %14 = vector.extract_strided_slice %4 {offsets = [0, 41], sizes = [4, 384], strides = [1, 1]} : vector<4x512xbf16> to vector<4x384xbf16>
    %15 = vector.extract_strided_slice %4 {offsets = [0, 42], sizes = [4, 384], strides = [1, 1]} : vector<4x512xbf16> to vector<4x384xbf16>
    %16 = vector.extract_strided_slice %4 {offsets = [0, 43], sizes = [4, 384], strides = [1, 1]} : vector<4x512xbf16> to vector<4x384xbf16>
    %17 = vector.extract_strided_slice %4 {offsets = [0, 60], sizes = [4, 384], strides = [1, 1]} : vector<4x512xbf16> to vector<4x384xbf16>
    %18 = vector.extract_strided_slice %4 {offsets = [0, 61], sizes = [4, 384], strides = [1, 1]} : vector<4x512xbf16> to vector<4x384xbf16>
    %19 = vector.extract_strided_slice %4 {offsets = [0, 62], sizes = [4, 384], strides = [1, 1]} : vector<4x512xbf16> to vector<4x384xbf16>
    %20 = vector.extract_strided_slice %4 {offsets = [0, 63], sizes = [4, 384], strides = [1, 1]} : vector<4x512xbf16> to vector<4x384xbf16>
    %21 = tpu.concatenate %5, %6, %7, %8, %9, %10, %11, %12, %13, %14, %15, %16, %17, %18, %19, %20 in 0 : vector<4x384xbf16>, vector<4x384xbf16>, vector<4x384xbf16>, vector<4x384xbf16>, vector<4x384xbf16>, vector<4x384xbf16>, vector<4x384xbf16>, vector<4x384xbf16>, vector<4x384xbf16>, vector<4x384xbf16>, vector<4x384xbf16>, vector<4x384xbf16>, vector<4x384xbf16>, vector<4x384xbf16>, vector<4x384xbf16>, vector<4x384xbf16> -> vector<64x384xbf16>
    %c0_5 = arith.constant 0 : index
    %c0_6 = arith.constant 0 : index
    %22 = vector.load %arg4[%c0_5, %c0_6] : memref<8x64xbf16, #tpu.memory_space<vmem>>, vector<8x64xbf16>
    %cst = arith.constant dense<0.000000e+00> : vector<8x384xf32>
    %23 = tpu.matmul %22, %21, %cst {dimension_numbers = #tpu.dot_dimension_numbers<[1], [0], [0], [1], [0, 0, 1, 1], [], []>} : vector<8x64xbf16>, vector<64x384xbf16>, vector<8x384xf32> -> vector<8x384xf32>
    %c0_7 = arith.constant 0 : index
    %c0_8 = arith.constant 0 : index
    %24 = vector.load %arg5[%c0_7, %c0_8] : memref<8x1xf32, #tpu.memory_space<vmem>>, vector<8x1xf32>
    %25 = vector.broadcast %24 : vector<8x1xf32> to vector<8x384xf32>
    %26 = arith.mulf %23, %25 : vector<8x384xf32>
    %c0_9 = arith.constant 0 : index
    %c0_10 = arith.constant 0 : index
    %27 = vector.load %arg6[%c0_9, %c0_10] : memref<8x1xf32, #tpu.memory_space<vmem>>, vector<8x1xf32>
    %28 = vector.broadcast %27 : vector<8x1xf32> to vector<8x384xf32>
    %29 = arith.addf %26, %28 : vector<8x384xf32>
    %cst_11 = arith.constant 0.000000e+00 : f32
    %30 = vector.broadcast %cst_11 : f32 to vector<8x384xf32>
    %31 = arith.maximumf %29, %30 : vector<8x384xf32>
    %c0_12 = arith.constant 0 : index
    %c0_13 = arith.constant 0 : index
    %c0_14 = arith.constant 0 : index
    %32 = vector.load %arg7[%c0_12, %c0_13, %c0_14] : memref<1x8x384xf32, #tpu.memory_space<vmem>>, vector<1x8x384xf32>
    %33 = vector.shape_cast %32 : vector<1x8x384xf32> to vector<8x384xf32>
    %34 = vector.shape_cast %31 : vector<8x384xf32> to vector<1x8x384xf32>
    tpu.vector_store %arg7[%c0_12, %c0_13, %c0_14], %34 {strides = array<i32>} : memref<1x8x384xf32, #tpu.memory_space<vmem>>, vector<1x8x384xf32>,
    return
  }
  func.func @transform_0(%arg0: i32, %arg1: i32) -> (i32, i32, i32) {
    %c0_i32 = arith.constant 0 : i32
    %c0_i32_0 = arith.constant 0 : i32
    return %arg0, %c0_i32, %arg1 : i32, i32, i32
  }
  func.func @transform_1(%arg0: i32, %arg1: i32) -> (i32, i32, i32) {
    %c1_i32 = arith.constant 1 : i32
    %0 = arith.addi %arg1, %c1_i32 : i32
    %c3_i32 = arith.constant 3 : i32
    %1 = arith.muli %0, %c3_i32 : i32
    %c0_i32 = arith.constant 0 : i32
    %c0_i32_0 = arith.constant 0 : i32
    return %arg0, %c0_i32, %1 : i32, i32, i32
  }
  func.func @transform_2(%arg0: i32, %arg1: i32) -> (i32, i32) {
    %c0_i32 = arith.constant 0 : i32
    %c0_i32_0 = arith.constant 0 : i32
    %c0_i32_1 = arith.constant 0 : i32
    return %c0_i32, %c0_i32_0 : i32, i32
  }
  func.func @transform_3(%arg0: i32, %arg1: i32) -> (i32, i32) {
    %c0_i32 = arith.constant 0 : i32
    %c0_i32_0 = arith.constant 0 : i32
    %c0_i32_1 = arith.constant 0 : i32
    return %c0_i32, %c0_i32_0 : i32, i32
  }
  func.func @transform_4(%arg0: i32, %arg1: i32) -> (i32, i32) {
    %c0_i32 = arith.constant 0 : i32
    %c0_i32_0 = arith.constant 0 : i32
    %c0_i32_1 = arith.constant 0 : i32
    return %c0_i32, %c0_i32_0 : i32, i32
  }
  func.func @transform_5(%arg0: i32, %arg1: i32) -> (i32, i32, i32) {
    %c0_i32 = arith.constant 0 : i32
    %c0_i32_0 = arith.constant 0 : i32
    return %arg0, %c0_i32, %arg1 : i32, i32, i32
  }
}

</mosaic_0001>

<llo_original>
// kernel: dnr_forward.3
$region0: #{dnr_forward.3}
  #allocation0 [shape = 'u32[]', space=smem, size = 0x4, offset = 0x4, fixed_abs, tag = 'smem constant byte address 0x4 - core index']
  #allocation1 [shape = 'u32[144,128]{1,0:T(1,128)}', space=vmem, size = 0x12000, scoped, tag = 'internal scratch']
  %s0 = inlined_call_operand.vmem [shape: bf16[2,4,512], index: 0, kind: input, shape index: {}, may-alias: {0,1}]
  %s1 = inlined_call_operand.vmem [shape: bf16[2,4,512], index: 1, kind: input, shape index: {}, may-alias: {0,1}]
  %s2 = inlined_call_operand.vmem [shape: bf16[8,64], index: 2, kind: input, shape index: {}]
  %s3 = inlined_call_operand.vmem [shape: f32[8,1], index: 3, kind: input, shape index: {}]
  %s4 = inlined_call_operand.vmem [shape: f32[8,1], index: 4, kind: input, shape index: {}]
  %s5 = inlined_call_operand.vmem [shape: f32[2,8,384], index: 5, kind: output, shape index: {}]
  %s6 = sld [smem:[#allocation0]]
  $region53: #{dnr_forward.3} parent=0
    _
  %s8 = ssub.s32 1, %s6
  %s9 = scalar_select 0, %s8, %s6
  loop: start=0, step=1, limit=4
  $region2: #{dnr_forward.3} parent=0 // loop_pre_header
    _
  $region3: #{dnr_forward.3} parent=0 // loop_header
    %s11 = sphi 0, %s15
    %p12 = scmp.ge.s32.totalorder %s11, 4
    %s18 = sphi 0, %s30
    %s19 = sphi 0, %s26
    %s20 = sphi 0, %s18
    %s21 = sphi 0, %s19
    %s22 = sphi 0, %s20
    %s23 = sphi 0, %s21
    %s35 = sphi 0, %s37
    %s38 = sphi 0, %s35
    %s39 = sphi 0, %s38
    %s55 = sphi 0, %s39
    %s67 = sphi 0, %s69
    %s70 = sphi 0, %s67
    %s71 = sphi 0, %s70
    %s87 = sphi 0, %s71
    %s91 = sphi 0, %s91
    %s93 = sphi 0, %s91
    %s94 = sphi 0, %s93
    %s108 = sphi 0, %s94
    %s112 = sphi 0, %s112
    %s114 = sphi 0, %s112
    %s115 = sphi 0, %s114
    %s129 = sphi 0, %s115
    %s133 = sphi 0, %s133
    %s135 = sphi 0, %s133
    %s136 = sphi 0, %s135
    %s150 = sphi 0, %s136
    %s158 = sphi 0, %s160
    %s161 = sphi 0, %s158
    %s162 = sphi 0, %s161
    %s178 = sphi 0, %s162
  $region4: #{dnr_forward.3} parent=0 // loop_header_branch
    %14 = sbr.rel (%p12) target = $region8
  $region5: #{dnr_forward.3} parent=0 // loop_body
    %s16 = ssub.s32 %s11, 1
    %s17 = ssub.s32 %s11, 2
    %s24 = sadd.s32 1, %s19
    %p25 = scmp.ge.s32.totalorder %s24, 1
    %s26 = scalar_select %p25, 0, %s24
    %s27 = sadd.s32 1, %s18
    %s28 = scalar_select %p25, %s27, %s18
    %p29 = scmp.ge.s32.totalorder %s28, 2
    %s30 = scalar_select %p29, 0, %s28
    %s31 = ssub.s32 %s18, %s30
    %s32 = ssub.s32 %s19, %s26
    %s33 = sor.u32 %s31, %s32
    %p34 = scmp.eq.s32.totalorder %s33, 0
    %s36 = sadd.s32 %s35, 1
    %s37 = scalar_select %p34, %s35, %s36
    %p40 = pneg %p34
    %p41 = scmp.eq.s32.totalorder %s11, 1
    %p42 = por %p40, %p41
    %p43 = scmp.ne.s32.totalorder %s35, %s38
    %p44 = scmp.eq.s32.totalorder %s11, 0
    %p45 = por %p43, %p44
    %p46 = scmp.ne.s32.totalorder %s35, %s38
    %p47 = scmp.eq.s32.totalorder %s16, 1
    %p48 = por %p46, %p47
    %p49 = scmp.ne.s32.totalorder %s38, %s39
    %p50 = scmp.eq.s32.totalorder %s16, 0
    %p51 = por %p49, %p50
    %p52 = scmp.ne.s32.totalorder %s38, %s39
    %p53 = scmp.eq.s32.totalorder %s17, 1
    %p54 = por %p52, %p53
    %p56 = scmp.ne.s32.totalorder %s39, %s55
    %p57 = scmp.eq.s32.totalorder %s17, 0
    %p58 = por %p56, %p57
    %s59 = sadd.s32 %s19, 1
    %s60 = smul.u32 %s59, 3
    %s61 = sadd.s32 %s26, 1
    %s62 = smul.u32 %s61, 3
    %s63 = ssub.s32 %s18, %s30
    %s64 = ssub.s32 %s60, %s62
    %s65 = sor.u32 %s63, %s64
    %p66 = scmp.eq.s32.totalorder %s65, 0
    %s68 = sadd.s32 %s67, 1
    %s69 = scalar_select %p66, %s67, %s68
    %p72 = pneg %p66
    %p73 = scmp.eq.s32.totalorder %s11, 1
    %p74 = por %p72, %p73
    %p75 = scmp.ne.s32.totalorder %s67, %s70
    %p76 = scmp.eq.s32.totalorder %s11, 0
    %p77 = por %p75, %p76
    %p78 = scmp.ne.s32.totalorder %s67, %s70
    %p79 = scmp.eq.s32.totalorder %s16, 1
    %p80 = por %p78, %p79
    %p81 = scmp.ne.s32.totalorder %s70, %s71
    %p82 = scmp.eq.s32.totalorder %s16, 0
    %p83 = por %p81, %p82
    %p84 = scmp.ne.s32.totalorder %s70, %s71
    %p85 = scmp.eq.s32.totalorder %s17, 1
    %p86 = por %p84, %p85
    %p88 = scmp.ne.s32.totalorder %s71, %s87
    %p89 = scmp.eq.s32.totalorder %s17, 0
    %p90 = por %p88, %p89
    %s92 = sadd.s32 %s91, 1
    %p95 = scmp.eq.s32.totalorder %s11, 1
    %p96 = scmp.ne.s32.totalorder %s91, %s93
    %p97 = scmp.eq.s32.totalorder %s11, 0
    %p98 = por %p96, %p97
    %p99 = scmp.ne.s32.totalorder %s91, %s93
    %p100 = scmp.eq.s32.totalorder %s16, 1
    %p101 = por %p99, %p100
    %p102 = scmp.ne.s32.totalorder %s93, %s94
    %p103 = scmp.eq.s32.totalorder %s16, 0
    %p104 = por %p102, %p103
    %p105 = scmp.ne.s32.totalorder %s93, %s94
    %p106 = scmp.eq.s32.totalorder %s17, 1
    %p107 = por %p105, %p106
    %p109 = scmp.ne.s32.totalorder %s94, %s108
    %p110 = scmp.eq.s32.totalorder %s17, 0
    %p111 = por %p109, %p110
    %s113 = sadd.s32 %s112, 1
    %p116 = scmp.eq.s32.totalorder %s11, 1
    %p117 = scmp.ne.s32.totalorder %s112, %s114
    %p118 = scmp.eq.s32.totalorder %s11, 0
    %p119 = por %p117, %p118
    %p120 = scmp.ne.s32.totalorder %s112, %s114
    %p121 = scmp.eq.s32.totalorder %s16, 1
    %p122 = por %p120, %p121
    %p123 = scmp.ne.s32.totalorder %s114, %s115
    %p124 = scmp.eq.s32.totalorder %s16, 0
    %p125 = por %p123, %p124
    %p126 = scmp.ne.s32.totalorder %s114, %s115
    %p127 = scmp.eq.s32.totalorder %s17, 1
    %p128 = por %p126, %p127
    %p130 = scmp.ne.s32.totalorder %s115, %s129
    %p131 = scmp.eq.s32.totalorder %s17, 0
    %p132 = por %p130, %p131
    %s134 = sadd.s32 %s133, 1
    %p137 = scmp.eq.s32.totalorder %s11, 1
    %p138 = scmp.ne.s32.totalorder %s133, %s135
    %p139 = scmp.eq.s32.totalorder %s11, 0
    %p140 = por %p138, %p139
    %p141 = scmp.ne.s32.totalorder %s133, %s135
    %p142 = scmp.eq.s32.totalorder %s16, 1
    %p143 = por %p141, %p142
    %p144 = scmp.ne.s32.totalorder %s135, %s136
    %p145 = scmp.eq.s32.totalorder %s16, 0
    %p146 = por %p144, %p145
    %p147 = scmp.ne.s32.totalorder %s135, %s136
    %p148 = scmp.eq.s32.totalorder %s17, 1
    %p149 = por %p147, %p148
    %p151 = scmp.ne.s32.totalorder %s136, %s150
    %p152 = scmp.eq.s32.totalorder %s17, 0
    %p153 = por %p151, %p152
    %s154 = ssub.s32 %s18, %s30
    %s155 = ssub.s32 %s19, %s26
    %s156 = sor.u32 %s154, %s155
    %p157 = scmp.eq.s32.totalorder %s156, 0
    %s159 = sadd.s32 %s158, 1
    %s160 = scalar_select %p157, %s158, %s159
    %p163 = pneg %p157
    %p164 = scmp.eq.s32.totalorder %s11, 1
    %p165 = por %p163, %p164
    %p166 = scmp.ne.s32.totalorder %s158, %s161
    %p167 = scmp.eq.s32.totalorder %s11, 0
    %p168 = por %p166, %p167
    %p169 = scmp.ne.s32.totalorder %s158, %s161
    %p170 = scmp.eq.s32.totalorder %s16, 1
    %p171 = por %p169, %p170
    %p172 = scmp.ne.s32.totalorder %s161, %s162
    %p173 = scmp.eq.s32.totalorder %s16, 0
    %p174 = por %p172, %p173
    %p175 = scmp.ne.s32.totalorder %s161, %s162
    %p176 = scmp.eq.s32.totalorder %s17, 1
    %p177 = por %p175, %p176
    %p179 = scmp.ne.s32.totalorder %s162, %s178
    %p180 = scmp.eq.s32.totalorder %s17, 0
    %p181 = por %p179, %p180
    %p182 = scmp.le.s32.totalorder 1, %s11
    %p183 = scmp.lt.s32.totalorder %s11, 3
    %p184 = pnand %p182, %p183
    %p185 = pneg %p184
    // Predicated region
    $region9: #{dnr_forward.3} parent=5 // pred_check
      _
    $region10: #{dnr_forward.3} parent=5 // pred_check_branch
      %187 = sbr.rel (%p184) target = $region12
    $region11: #{dnr_forward.3} parent=5 // pred_region
      %s188 = ssub.s32 %s11, 1
      // Predicated region
      $region13: #{dnr_forward.3} parent=11 // pred_check
        %p189 = pneg %p104
      $region14: #{dnr_forward.3} parent=11 // pred_check_branch
        %191 = sbr.rel (%p189) target = $region16
      $region15: #{dnr_forward.3} parent=11 // pred_region
        _
      $region16: #{dnr_forward.3} parent=11 // pred_fallthru
        _
      // Predicated region
      $region17: #{dnr_forward.3} parent=11 // pred_check
        %p192 = pneg %p125
      $region18: #{dnr_forward.3} parent=11 // pred_check_branch
        %194 = sbr.rel (%p192) target = $region20
      $region19: #{dnr_forward.3} parent=11 // pred_region
        _
      $region20: #{dnr_forward.3} parent=11 // pred_fallthru
        _
      // Predicated region
      $region21: #{dnr_forward.3} parent=11 // pred_check
        %p195 = pneg %p146
      $region22: #{dnr_forward.3} parent=11 // pred_check_branch
        %197 = sbr.rel (%p195) target = $region24
      $region23: #{dnr_forward.3} parent=11 // pred_region
        _
      $region24: #{dnr_forward.3} parent=11 // pred_fallthru
        _
    $region12: #{dnr_forward.3} parent=5 // pred_fallthru
      _
    %p198 = scmp.lt.s32.totalorder %s11, 2
    // Predicated region
    $region25: #{dnr_forward.3} parent=5 // pred_check
      %p199 = pneg %p198
    $region26: #{dnr_forward.3} parent=5 // pred_check_branch
      %201 = sbr.rel (%p199) target = $region28
    $region27: #{dnr_forward.3} parent=5 // pred_region
      // Predicated region
      $region29: #{dnr_forward.3} parent=27 // pred_check
        %p202 = pneg %p45
      $region30: #{dnr_forward.3} parent=27 // pred_check_branch
        %204 = sbr.rel (%p202) target = $region32
      $region31: #{dnr_forward.3} parent=27 // pred_region
        %s205 = smul.u32 3, %s19
        %s206 = ssub.s32 4, %s205
        %p207 = scmp.lt.s32.totalorder %s206, 3
        %s208 = scalar_select %p207, %s206, 3
        %s209 = smul.u32 32, %s208
        %p210 = scmp.lt.s32.totalorder %s18, 1
        %s211 = scalar_select %p210, %s18, 1
        %p212 = scmp.lt.s32.totalorder %s205, 3
        %s213 = scalar_select %p212, %s205, 3
        %s214 = smul.addr %s211, 4
        %s215 = sadd.s32 %s213, %s214
        %s216 = smul.addr %s215, 2
        %s217 = scalar_lea.vmem %s0, %s216
        %s218 = smul.u32 3, %s19
        %s219 = ssub.s32 4, %s218
        %p220 = scmp.lt.s32.totalorder %s219, 3
        %s221 = scalar_select %p220, %s219, 3
        %s222 = smul.u32 32, %s221
      $region32: #{dnr_forward.3} parent=27 // pred_fallthru
        _
      // Predicated region
      $region33: #{dnr_forward.3} parent=27 // pred_check
        %p223 = pneg %p77
      $region34: #{dnr_forward.3} parent=27 // pred_check_branch
        %225 = sbr.rel (%p223) target = $region36
      $region35: #{dnr_forward.3} parent=27 // pred_region
        %s226 = sadd.s32 %s19, 1
        %s227 = smul.u32 %s226, 3
        %p228 = scmp.lt.s32.totalorder %s18, 1
        %s229 = scalar_select %p228, %s18, 1
        %p230 = scmp.lt.s32.totalorder %s227, 3
        %s231 = scalar_select %p230, %s227, 3
        %s232 = smul.addr %s229, 4
        %s233 = sadd.s32 %s231, %s232
        %s234 = smul.addr %s233, 2
        %s235 = scalar_lea.vmem %s1, %s234
        %s236 = sadd.s32 %s19, 1
        %s237 = smul.u32 %s236, 3
      $region36: #{dnr_forward.3} parent=27 // pred_fallthru
        _
    $region28: #{dnr_forward.3} parent=5 // pred_fallthru
      _
    %p238 = scmp.le.s32.totalorder 1, %s11
    %p239 = scmp.lt.s32.totalorder %s11, 3
    %p240 = pnand %p238, %p239
    %p241 = pneg %p240
    // Predicated region
    $region37: #{dnr_forward.3} parent=5 // pred_check
      _
    $region38: #{dnr_forward.3} parent=5 // pred_check_branch
      %243 = sbr.rel (%p240) target = $region40
    $region39: #{dnr_forward.3} parent=5 // pred_region
      %s244 = ssub.s32 %s11, 1
      %s245 = smul.u32 3, %s21
      %s246 = ssub.s32 4, %s245
      %p247 = scmp.lt.s32.totalorder %s246, 3
      %s248 = scalar_select %p247, %s246, 3
      %s249 = smul.u32 32, %s248
      %p250 = scmp.lt.s32.totalorder %s20, 1
      %s251 = scalar_select %p250, %s20, 1
      %p252 = scmp.lt.s32.totalorder %s245, 3
      %s253 = scalar_select %p252, %s245, 3
      %s254 = smul.addr %s251, 4
      %s255 = sadd.s32 %s253, %s254
      %s256 = smul.addr %s255, 2
      %s257 = scalar_lea.vmem %s0, %s256
      %p258 = pneg %p51
      %p259 = pneg %p48
      %s260 = sadd.s32 %s21, 1
      %s261 = smul.u32 %s260, 3
      %p262 = scmp.lt.s32.totalorder %s20, 1
      %s263 = scalar_select %p262, %s20, 1
      %p264 = scmp.lt.s32.totalorder %s261, 3
      %s265 = scalar_select %p264, %s261, 3
      %s266 = smul.addr %s263, 4
      %s267 = sadd.s32 %s265, %s266
      %s268 = smul.addr %s267, 2
      %s269 = scalar_lea.vmem %s1, %s268
      %p270 = pneg %p83
      %p271 = pneg %p80
      %p272 = pneg %p104
      %p273 = pneg %p101
      %p274 = pneg %p125
      %p275 = pneg %p122
      %p276 = pneg %p146
      %p277 = pneg %p143
      %p278 = pneg %p174
      %p279 = pneg %p171
      %s280 = smul.u32 3, %s21
      %p281 = scmp.lt.s32.totalorder %s20, 1
      %s282 = scalar_select %p281, %s20, 1
      %p283 = scmp.lt.s32.totalorder %s280, 2
      %s284 = scalar_select %p283, %s280, 2
      %s285 = smul.addr %s282, 3
      %s286 = sadd.s32 %s284, %s285
      %s287 = smul.addr %s286, 8
      %s288 = scalar_lea.vmem %s5, %s287
      %s289 = smul.u32 3, %s21
      %s290 = ssub.s32 4, %s289
      %p291 = scmp.lt.s32.totalorder %s290, 3
      %s292 = scalar_select %p291, %s290, 3
      %s293 = smul.u32 32, %s292
      %p294 = scmp.lt.s32.totalorder %s20, 1
      %s295 = scalar_select %p294, %s20, 1
      %p296 = scmp.lt.s32.totalorder %s289, 3
      %s297 = scalar_select %p296, %s289, 3
      %s298 = smul.addr %s295, 4
      %s299 = sadd.s32 %s297, %s298
      %s300 = smul.addr %s299, 2
      %s301 = scalar_lea.vmem %s0, %s300
      %s302 = smul.u32 3, %s21
      %s303 = ssub.s32 4, %s302
      %p304 = scmp.lt.s32.totalorder %s303, 3
      %s305 = scalar_select %p304, %s303, 3
      %s306 = smul.u32 32, %s305
      %s307 = sadd.s32 %s21, 1
      %s308 = smul.u32 %s307, 3
      %p309 = scmp.lt.s32.totalorder %s20, 1
      %s310 = scalar_select %p309, %s20, 1
      %p311 = scmp.lt.s32.totalorder %s308, 3
      %s312 = scalar_select %p311, %s308, 3
      %s313 = smul.addr %s310, 4
      %s314 = sadd.s32 %s312, %s313
      %s315 = smul.addr %s314, 2
      %s316 = scalar_lea.vmem %s1, %s315
      %s317 = sadd.s32 %s21, 1
      %s318 = smul.u32 %s317, 3
      %s319 = smul.u32 3, %s21
      %p320 = scmp.lt.s32.totalorder %s20, 1
      %s321 = scalar_select %p320, %s20, 1
      %p322 = scmp.lt.s32.totalorder %s319, 2
      %s323 = scalar_select %p322, %s319, 2
      %s324 = smul.addr %s321, 3
      %s325 = sadd.s32 %s323, %s324
      %s326 = smul.addr %s325, 8
      %s327 = scalar_lea.vmem %s5, %s326
      %s328 = smul.u32 3, %s21
      %v330 = vld [vmem:[%s301] sm:$0x3f]
      %v331 = vld [vmem:[%s316] sm:$0x3]
      %v333 = vcombine.high %v330, %v330
      %v335 = vunpack.c.l.s4 1983009808
      %v336 = vunpack.c.0.s8 %v335
      %v337 = vlaneseq
      %v338 = vshrl.u32 %v337, 7
      %v339 = vsub.s32 %v336, %v338
      %v340 = vrot.slane %v330, %v339
      %v342 = vunpack.c.l.s4 1983009808
      %v343 = vunpack.c.0.s8 %v342
      %v344 = vlaneseq
      %v345 = vshrl.u32 %v344, 7
      %v346 = vsub.s32 %v343, %v345
      %v347 = vrot.slane %v333, %v346
      %v348 = vcombine.high %v340, %v340
      %v350 = vrot.slane %v340, 6
      %v351 = vrot.slane %v348, 6
      %v352 = vrot.slane %v347, 6
      %v353 = vrot.slane %v331, 6
      %354 = vrot.lane.b32.xlu0 %v350, 127
      %v355 = vpop.permute.xlu0 %354
      %356 = vrot.lane.b32.xlu0 %v351, 127
      %v357 = vpop.permute.xlu0 %356
      %358 = vrot.lane.b32.xlu0 %v352, 127
      %v359 = vpop.permute.xlu0 %358
      %360 = vrot.lane.b32.xlu0 %v353, 127
      %v361 = vpop.permute.xlu0 %360
      %vm362 = vcmask 1039360
      %v363 = vsel %vm362, %v355, %v357
      %v364 = vsel %vm362, %v357, %v359
      %v365 = vsel %vm362, %v359, %v361
      %v366 = vrot.slane %v340, 4
      %v367 = vrot.slane %v348, 4
      %v368 = vrot.slane %v347, 4
      %v369 = vrot.slane %v331, 4
      %370 = vrot.lane.b32.xlu0 %v366, 126
      %v371 = vpop.permute.xlu0 %370
      %372 = vrot.lane.b32.xlu0 %v367, 126
      %v373 = vpop.permute.xlu0 %372
      %374 = vrot.lane.b32.xlu0 %v368, 126
      %v375 = vpop.permute.xlu0 %374
      %376 = vrot.lane.b32.xlu0 %v369, 126
      %v377 = vpop.permute.xlu0 %376
      %vm378 = vcmask 1031168
      %v379 = vsel %vm378, %v371, %v373
      %v380 = vsel %vm378, %v373, %v375
      %v381 = vsel %vm378, %v375, %v377
      %v382 = vrot.slane %v340, 2
      %v383 = vrot.slane %v348, 2
      %v384 = vrot.slane %v347, 2
      %v385 = vrot.slane %v331, 2
      %386 = vrot.lane.b32.xlu0 %v382, 125
      %v387 = vpop.permute.xlu0 %386
      %388 = vrot.lane.b32.xlu0 %v383, 125
      %v389 = vpop.permute.xlu0 %388
      %390 = vrot.lane.b32.xlu0 %v384, 125
      %v391 = vpop.permute.xlu0 %390
      %392 = vrot.lane.b32.xlu0 %v385, 125
      %v393 = vpop.permute.xlu0 %392
      %vm394 = vcmask 1022976
      %v395 = vsel %vm394, %v387, %v389
      %v396 = vsel %vm394, %v389, %v391
      %v397 = vsel %vm394, %v391, %v393
      %398 = vrot.lane.b32.xlu0 %v340, 108
      %v399 = vpop.permute.xlu0 %398
      %400 = vrot.lane.b32.xlu0 %v348, 108
      %v401 = vpop.permute.xlu0 %400
      %402 = vrot.lane.b32.xlu0 %v347, 108
      %v403 = vpop.permute.xlu0 %402
      %404 = vrot.lane.b32.xlu0 %v331, 108
      %v405 = vpop.permute.xlu0 %404
      %vm406 = vcmask 883712
      %v407 = vsel %vm406, %v399, %v401
      %v408 = vsel %vm406, %v401, %v403
      %v409 = vsel %vm406, %v403, %v405
      %410 = vrot.lane.b32.xlu0 %v350, 107
      %v411 = vpop.permute.xlu0 %410
      %412 = vrot.lane.b32.xlu0 %v351, 107
      %v413 = vpop.permute.xlu0 %412
      %414 = vrot.lane.b32.xlu0 %v352, 107
      %v415 = vpop.permute.xlu0 %414
      %416 = vrot.lane.b32.xlu0 %v353, 107
      %v417 = vpop.permute.xlu0 %416
      %vm418 = vcmask 875520
      %v419 = vsel %vm418, %v411, %v413
      %v420 = vsel %vm418, %v413, %v415
      %v421 = vsel %vm418, %v415, %v417
      %422 = vrot.lane.b32.xlu0 %v366, 106
      %v423 = vpop.permute.xlu0 %422
      %424 = vrot.lane.b32.xlu0 %v367, 106
      %v425 = vpop.permute.xlu0 %424
      %426 = vrot.lane.b32.xlu0 %v368, 106
      %v427 = vpop.permute.xlu0 %426
      %428 = vrot.lane.b32.xlu0 %v369, 106
      %v429 = vpop.permute.xlu0 %428
      %vm430 = vcmask 867328
      %v431 = vsel %vm430, %v423, %v425
      %v432 = vsel %vm430, %v425, %v427
      %v433 = vsel %vm430, %v427, %v429
      %434 = vrot.lane.b32.xlu0 %v382, 105
      %v435 = vpop.permute.xlu0 %434
      %436 = vrot.lane.b32.xlu0 %v383, 105
      %v437 = vpop.permute.xlu0 %436
      %438 = vrot.lane.b32.xlu0 %v384, 105
      %v439 = vpop.permute.xlu0 %438
      %440 = vrot.lane.b32.xlu0 %v385, 105
      %v441 = vpop.permute.xlu0 %440
      %vm442 = vcmask 859136
      %v443 = vsel %vm442, %v435, %v437
      %v444 = vsel %vm442, %v437, %v439
      %v445 = vsel %vm442, %v439, %v441
      %446 = vrot.lane.b32.xlu0 %v340, 88
      %v447 = vpop.permute.xlu0 %446
      %448 = vrot.lane.b32.xlu0 %v348, 88
      %v449 = vpop.permute.xlu0 %448
      %450 = vrot.lane.b32.xlu0 %v347, 88
      %v451 = vpop.permute.xlu0 %450
      %452 = vrot.lane.b32.xlu0 %v331, 88
      %v453 = vpop.permute.xlu0 %452
      %vm454 = vcmask 719872
      %v455 = vsel %vm454, %v447, %v449
      %v456 = vsel %vm454, %v449, %v451
      %v457 = vsel %vm454, %v451, %v453
      %458 = vrot.lane.b32.xlu0 %v350, 87
      %v459 = vpop.permute.xlu0 %458
      %460 = vrot.lane.b32.xlu0 %v351, 87
      %v461 = vpop.permute.xlu0 %460
      %462 = vrot.lane.b32.xlu0 %v352, 87
      %v463 = vpop.permute.xlu0 %462
      %464 = vrot.lane.b32.xlu0 %v353, 87
      %v465 = vpop.permute.xlu0 %464
      %vm466 = vcmask 711680
      %v467 = vsel %vm466, %v459, %v461
      %v468 = vsel %vm466, %v461, %v463
      %v469 = vsel %vm466, %v463, %v465
      %470 = vrot.lane.b32.xlu0 %v366, 86
      %v471 = vpop.permute.xlu0 %470
      %472 = vrot.lane.b32.xlu0 %v367, 86
      %v473 = vpop.permute.xlu0 %472
      %474 = vrot.lane.b32.xlu0 %v368, 86
      %v475 = vpop.permute.xlu0 %474
      %476 = vrot.lane.b32.xlu0 %v369, 86
      %v477 = vpop.permute.xlu0 %476
      %vm478 = vcmask 703488
      %v479 = vsel %vm478, %v471, %v473
      %v480 = vsel %vm478, %v473, %v475
      %v481 = vsel %vm478, %v475, %v477
      %482 = vrot.lane.b32.xlu0 %v382, 85
      %v483 = vpop.permute.xlu0 %482
      %484 = vrot.lane.b32.xlu0 %v383, 85
      %v485 = vpop.permute.xlu0 %484
      %486 = vrot.lane.b32.xlu0 %v384, 85
      %v487 = vpop.permute.xlu0 %486
      %488 = vrot.lane.b32.xlu0 %v385, 85
      %v489 = vpop.permute.xlu0 %488
      %vm490 = vcmask 695296
      %v491 = vsel %vm490, %v483, %v485
      %v492 = vsel %vm490, %v485, %v487
      %v493 = vsel %vm490, %v487, %v489
      %494 = vrot.lane.b32.xlu0 %v340, 68
      %v495 = vpop.permute.xlu0 %494
      %496 = vrot.lane.b32.xlu0 %v348, 68
      %v497 = vpop.permute.xlu0 %496
      %498 = vrot.lane.b32.xlu0 %v347, 68
      %v499 = vpop.permute.xlu0 %498
      %500 = vrot.lane.b32.xlu0 %v331, 68
      %v501 = vpop.permute.xlu0 %500
      %vm502 = vcmask 556032
      %v503 = vsel %vm502, %v495, %v497
      %v504 = vsel %vm502, %v497, %v499
      %v505 = vsel %vm502, %v499, %v501
      %506 = vrot.lane.b32.xlu0 %v350, 67
      %v507 = vpop.permute.xlu0 %506
      %508 = vrot.lane.b32.xlu0 %v351, 67
      %v509 = vpop.permute.xlu0 %508
      %510 = vrot.lane.b32.xlu0 %v352, 67
      %v511 = vpop.permute.xlu0 %510
      %512 = vrot.lane.b32.xlu0 %v353, 67
      %v513 = vpop.permute.xlu0 %512
      %vm514 = vcmask 547840
      %v515 = vsel %vm514, %v507, %v509
      %v516 = vsel %vm514, %v509, %v511
      %v517 = vsel %vm514, %v511, %v513
      %518 = vrot.lane.b32.xlu0 %v366, 66
      %v519 = vpop.permute.xlu0 %518
      %520 = vrot.lane.b32.xlu0 %v367, 66
      %v521 = vpop.permute.xlu0 %520
      %522 = vrot.lane.b32.xlu0 %v368, 66
      %v523 = vpop.permute.xlu0 %522
      %524 = vrot.lane.b32.xlu0 %v369, 66
      %v525 = vpop.permute.xlu0 %524
      %vm526 = vcmask 539648
      %v527 = vsel %vm526, %v519, %v521
      %v528 = vsel %vm526, %v521, %v523
      %v529 = vsel %vm526, %v523, %v525
      %530 = vrot.lane.b32.xlu0 %v382, 65
      %v531 = vpop.permute.xlu0 %530
      %532 = vrot.lane.b32.xlu0 %v383, 65
      %v533 = vpop.permute.xlu0 %532
      %534 = vrot.lane.b32.xlu0 %v384, 65
      %v535 = vpop.permute.xlu0 %534
      %536 = vrot.lane.b32.xlu0 %v385, 65
      %v537 = vpop.permute.xlu0 %536
      %vm538 = vcmask 531456
      %v539 = vsel %vm538, %v531, %v533
      %v540 = vsel %vm538, %v533, %v535
      %v541 = vsel %vm538, %v535, %v537
      %vm542 = vcmask 1041408
      %v545 = vsel %vm542, %v340, %v363
      %v548 = vsel %vm542, %v348, %v364
      %v551 = vsel %vm542, %v347, %v365
      %vm552 = vcmask 1043456
      %v554 = vsel %vm552, %v545, %v379
      %v556 = vsel %vm552, %v548, %v380
      %v558 = vsel %vm552, %v551, %v381
      %vm559 = vcmask 1045504
      %v561 = vsel %vm559, %v554, %v395
      %v564 = vsel %vm559, %v556, %v396
      %v567 = vsel %vm559, %v558, %v397
      %v571 = vsel %vm542, %v407, %v419
      %v574 = vsel %vm542, %v408, %v420
      %v577 = vsel %vm542, %v409, %v421
      %v579 = vsel %vm552, %v571, %v431
      %v581 = vsel %vm552, %v574, %v432
      %v583 = vsel %vm552, %v577, %v433
      %v585 = vsel %vm559, %v579, %v443
      %v588 = vsel %vm559, %v581, %v444
      %v591 = vsel %vm559, %v583, %v445
      %v595 = vsel %vm542, %v455, %v467
      %v598 = vsel %vm542, %v456, %v468
      %v601 = vsel %vm542, %v457, %v469
      %v603 = vsel %vm552, %v595, %v479
      %v605 = vsel %vm552, %v598, %v480
      %v607 = vsel %vm552, %v601, %v481
      %v609 = vsel %vm559, %v603, %v491
      %v612 = vsel %vm559, %v605, %v492
      %v615 = vsel %vm559, %v607, %v493
      %v619 = vsel %vm542, %v503, %v515
      %v622 = vsel %vm542, %v504, %v516
      %v625 = vsel %vm542, %v505, %v517
      %v627 = vsel %vm552, %v619, %v527
      %v629 = vsel %vm552, %v622, %v528
      %v631 = vsel %vm552, %v625, %v529
      %v633 = vsel %vm559, %v627, %v539
      %v636 = vsel %vm559, %v629, %v540
      %v639 = vsel %vm559, %v631, %v541
      %v641 = vld [vmem:[%s2] sm:$0xf]
      %vm642 = vcmask 523264
      %v644 = vsel %vm642, %v641, 0
      %646 = vmatprep.subr.bf16.mxu0 %v564
      %647 = vmatpush1.bf16.msra.mxu0 %v561
      %648 = vmatprep.subr.bf16.mxu0 %v588
      %649 = vmatpush1.bf16.msra.mxu0 %v585
      %650 = vmatprep.subr.bf16.mxu0 %v612
      %651 = vmatpush1.bf16.msra.mxu0 %v609
      %652 = vmatprep.subr.bf16.mxu0 %v636
      %653 = vmatpush1.bf16.msra.mxu0 %v633
      %654 = vmatprep.subr.bf16.mxu0 0
      %655 = vmatpush1.bf16.msra.mxu0 0
      %656 = vmatprep.subr.bf16.mxu0 0
      %657 = vmatpush1.bf16.msra.mxu0 0
      %658 = vmatprep.subr.bf16.mxu0 0
      %659 = vmatpush1.bf16.msra.mxu0 0
      %660 = vmatprep.subr.bf16.mxu0 0
      %661 = vmatpush1.bf16.msra.mxu0 0
      %662 = vmatprep.subr.bf16.mxu0 0
      %663 = vmatpush1.bf16.msra.mxu0 0
      %664 = vmatprep.subr.bf16.mxu0 0
      %665 = vmatpush1.bf16.msra.mxu0 0
      %666 = vmatprep.subr.bf16.mxu0 0
      %667 = vmatpush1.bf16.msra.mxu0 0
      %668 = vmatprep.subr.bf16.mxu0 0
      %669 = vmatpush1.bf16.msra.mxu0 0
      %670 = vmatprep.subr.bf16.mxu0 0
      %671 = vmatpush1.bf16.msra.mxu0 0
      %672 = vmatprep.subr.bf16.mxu0 0
      %673 = vmatpush1.bf16.msra.mxu0 0
      %674 = vmatprep.subr.bf16.mxu0 0
      %675 = vmatpush1.bf16.msra.mxu0 0
      %676 = vmatprep.subr.bf16.mxu0 0
      %677 = vmatpush1.bf16.msra.mxu0 0
      %678 = vmatprep.mubr.bf16.mxu0 0
      %679 = vmatmul.mubr.bf16.gmra.mrb[0].mxu0 %v644
      %v680 = vpop.f32.mrb[0].mxu0
      %v681 = vadd.f32 0.0, %v680
      %v682 = vpop.f32.mrb[0].mxu0
      %v683 = vadd.f32 0.0, %v682
      %v684 = vpop.f32.mrb[0].mxu0
      %v685 = vpop.f32.mrb[0].mxu0
      %686 = vdwg.mxu0
      %687 = vmatprep.subr.bf16.mxu0 0
      %688 = vmatpush1.bf16.msra.mxu0 %v567
      %689 = vmatprep.subr.bf16.mxu0 0
      %690 = vmatpush1.bf16.msra.mxu0 %v591
      %691 = vmatprep.subr.bf16.mxu0 0
      %692 = vmatpush1.bf16.msra.mxu0 %v615
      %693 = vmatprep.subr.bf16.mxu0 0
      %694 = vmatpush1.bf16.msra.mxu0 %v639
      %695 = vmatprep.subr.bf16.mxu0 0
      %696 = vmatpush1.bf16.msra.mxu0 0
      %697 = vmatprep.subr.bf16.mxu0 0
      %698 = vmatpush1.bf16.msra.mxu0 0
      %699 = vmatprep.subr.bf16.mxu0 0
      %700 = vmatpush1.bf16.msra.mxu0 0
      %701 = vmatprep.subr.bf16.mxu0 0
      %702 = vmatpush1.bf16.msra.mxu0 0
      %703 = vmatprep.subr.bf16.mxu0 0
      %704 = vmatpush1.bf16.msra.mxu0 0
      %705 = vmatprep.subr.bf16.mxu0 0
      %706 = vmatpush1.bf16.msra.mxu0 0
      %707 = vmatprep.subr.bf16.mxu0 0
      %708 = vmatpush1.bf16.msra.mxu0 0
      %709 = vmatprep.subr.bf16.mxu0 0
      %710 = vmatpush1.bf16.msra.mxu0 0
      %711 = vmatprep.subr.bf16.mxu0 0
      %712 = vmatpush1.bf16.msra.mxu0 0
      %713 = vmatprep.subr.bf16.mxu0 0
      %714 = vmatpush1.bf16.msra.mxu0 0
      %715 = vmatprep.subr.bf16.mxu0 0
      %716 = vmatpush1.bf16.msra.mxu0 0
      %717 = vmatprep.subr.bf16.mxu0 0
      %718 = vmatpush1.bf16.msra.mxu0 0
      %719 = vmatprep.mubr.bf16.mxu0 0
      %720 = vmatmul.mubr.bf16.gmra.mrb[0].mxu0 %v644
      %v721 = vpop.f32.mrb[0].mxu0
      %v722 = vadd.f32 0.0, %v721
      %v723 = vpop.f32.mrb[0].mxu0
      %v724 = vpop.f32.mrb[0].mxu0
      %v725 = vpop.f32.mrb[0].mxu0
      %726 = vdwg.mxu0
      %v727 = vld [vmem:[%s3] sm:$0xff]
      %729 = vset.pattern.permute.xlu0 0
      %730 = vperm.xlu0 %729, %v727
      %v731 = vpop.permute.xlu0 %730
      %v733 = vmul.f32 %v681, %v731
      %v734 = vmul.f32 %v683, %v731
      %v735 = vmul.f32 %v722, %v731
      %v736 = vld [vmem:[%s4] sm:$0xff]
      %738 = vset.pattern.permute.xlu0 0
      %739 = vperm.xlu0 %738, %v736
      %v740 = vpop.permute.xlu0 %739
      %v742 = vadd.f32 %v733, %v740
      %v743 = vadd.f32 %v734, %v740
      %v744 = vadd.f32 %v735, %v740
      %v745 = vmax.f32 %v742, 0.0
      %v746 = vmax.f32 %v743, 0.0
      %v747 = vmax.f32 %v744, 0.0
      %748 = vst [vmem:[%s327] sm:$0xff] %v745
      %749 = vst [vmem:[%s327 + $0x8] sm:$0xff] %v746
      %750 = vst [vmem:[%s327 + $0x10] sm:$0xff] %v747
      %s751 = smul.u32 3, %s21
      %p752 = scmp.lt.s32.totalorder %s20, 1
      %s753 = scalar_select %p752, %s20, 1
      %p754 = scmp.lt.s32.totalorder %s751, 2
      %s755 = scalar_select %p754, %s751, 2
      %s756 = smul.addr %s753, 3
      %s757 = sadd.s32 %s755, %s756
      %s758 = smul.addr %s757, 8
      %s759 = scalar_lea.vmem %s5, %s758
      // Predicated region
      $region41: #{dnr_forward.3} parent=39 // pred_check
        %p760 = pneg %p171
      $region42: #{dnr_forward.3} parent=39 // pred_check_branch
        %762 = sbr.rel (%p760) target = $region44
      $region43: #{dnr_forward.3} parent=39 // pred_region
        %s763 = smul.u32 3, %s21
      $region44: #{dnr_forward.3} parent=39 // pred_fallthru
        _
    $region40: #{dnr_forward.3} parent=5 // pred_fallthru
      _
    %p764 = scmp.le.s32.totalorder 2, %s11
    // Predicated region
    $region45: #{dnr_forward.3} parent=5 // pred_check
      %p765 = pneg %p764
    $region46: #{dnr_forward.3} parent=5 // pred_check_branch
      %767 = sbr.rel (%p765) target = $region48
    $region47: #{dnr_forward.3} parent=5 // pred_region
      %s768 = ssub.s32 %s11, 2
      // Predicated region
      $region49: #{dnr_forward.3} parent=47 // pred_check
        %p769 = pneg %p177
      $region50: #{dnr_forward.3} parent=47 // pred_check_branch
        %771 = sbr.rel (%p769) target = $region52
      $region51: #{dnr_forward.3} parent=47 // pred_region
        %s772 = smul.u32 3, %s23
        %p773 = scmp.lt.s32.totalorder %s22, 1
        %s774 = scalar_select %p773, %s22, 1
        %p775 = scmp.lt.s32.totalorder %s772, 2
        %s776 = scalar_select %p775, %s772, 2
        %s777 = smul.addr %s774, 3
        %s778 = sadd.s32 %s776, %s777
        %s779 = smul.addr %s778, 8
        %s780 = scalar_lea.vmem %s5, %s779
      $region52: #{dnr_forward.3} parent=47 // pred_fallthru
        _
    $region48: #{dnr_forward.3} parent=5 // pred_fallthru
      _
  $region6: #{dnr_forward.3} parent=0 // loop_footer
    %s15 = sadd.s32 1, %s11
  $region7: #{dnr_forward.3} parent=0 // loop_footer_branch
    %10 = sbr.rel target = $region3
  $region8: #{dnr_forward.3} parent=0 // loop_exit
    _

// kernel: dnr_forward.2
$region0: #{dnr_forward.2}
  #allocation0 [shape = 'u32[]', space=smem, size = 0x4, offset = 0x4, fixed_abs, tag = 'smem constant byte address 0x4 - core index']
  #allocation1 [shape = 'u32[144,128]{1,0:T(1,128)}', space=vmem, size = 0x12000, scoped, tag = 'internal scratch']
  %s0 = inlined_call_operand.vmem [shape: bf16[2,4,512], index: 0, kind: input, shape index: {}, may-alias: {0,1}]
  %s1 = inlined_call_operand.vmem [shape: bf16[2,4,512], index: 1, kind: input, shape index: {}, may-alias: {0,1}]
  %s2 = inlined_call_operand.vmem [shape: bf16[8,64], index: 2, kind: input, shape index: {}]
  %s3 = inlined_call_operand.vmem [shape: f32[2,8,2], index: 3, kind: output, shape index: {}]
  %s4 = sld [smem:[#allocation0]]
  $region49: #{dnr_forward.2} parent=0
    _
  %s6 = ssub.s32 1, %s4
  %s7 = scalar_select 0, %s6, %s4
  loop: start=0, step=1, limit=4
  $region2: #{dnr_forward.2} parent=0 // loop_pre_header
    _
  $region3: #{dnr_forward.2} parent=0 // loop_header
    %s9 = sphi 0, %s13
    %p10 = scmp.ge.s32.totalorder %s9, 4
    %s16 = sphi 0, %s28
    %s17 = sphi 0, %s24
    %s18 = sphi 0, %s16
    %s19 = sphi 0, %s17
    %s20 = sphi 0, %s18
    %s21 = sphi 0, %s19
    %s33 = sphi 0, %s35
    %s36 = sphi 0, %s33
    %s37 = sphi 0, %s36
    %s53 = sphi 0, %s37
    %s65 = sphi 0, %s67
    %s68 = sphi 0, %s65
    %s69 = sphi 0, %s68
    %s85 = sphi 0, %s69
    %s89 = sphi 0, %s89
    %s91 = sphi 0, %s89
    %s92 = sphi 0, %s91
    %s106 = sphi 0, %s92
    %s112 = sphi 0, %s114
    %s115 = sphi 0, %s112
    %s116 = sphi 0, %s115
    %s132 = sphi 0, %s116
  $region4: #{dnr_forward.2} parent=0 // loop_header_branch
    %12 = sbr.rel (%p10) target = $region8
  $region5: #{dnr_forward.2} parent=0 // loop_body
    %s14 = ssub.s32 %s9, 1
    %s15 = ssub.s32 %s9, 2
    %s22 = sadd.s32 1, %s17
    %p23 = scmp.ge.s32.totalorder %s22, 1
    %s24 = scalar_select %p23, 0, %s22
    %s25 = sadd.s32 1, %s16
    %s26 = scalar_select %p23, %s25, %s16
    %p27 = scmp.ge.s32.totalorder %s26, 2
    %s28 = scalar_select %p27, 0, %s26
    %s29 = ssub.s32 %s16, %s28
    %s30 = ssub.s32 %s17, %s24
    %s31 = sor.u32 %s29, %s30
    %p32 = scmp.eq.s32.totalorder %s31, 0
    %s34 = sadd.s32 %s33, 1
    %s35 = scalar_select %p32, %s33, %s34
    %p38 = pneg %p32
    %p39 = scmp.eq.s32.totalorder %s9, 1
    %p40 = por %p38, %p39
    %p41 = scmp.ne.s32.totalorder %s33, %s36
    %p42 = scmp.eq.s32.totalorder %s9, 0
    %p43 = por %p41, %p42
    %p44 = scmp.ne.s32.totalorder %s33, %s36
    %p45 = scmp.eq.s32.totalorder %s14, 1
    %p46 = por %p44, %p45
    %p47 = scmp.ne.s32.totalorder %s36, %s37
    %p48 = scmp.eq.s32.totalorder %s14, 0
    %p49 = por %p47, %p48
    %p50 = scmp.ne.s32.totalorder %s36, %s37
    %p51 = scmp.eq.s32.totalorder %s15, 1
    %p52 = por %p50, %p51
    %p54 = scmp.ne.s32.totalorder %s37, %s53
    %p55 = scmp.eq.s32.totalorder %s15, 0
    %p56 = por %p54, %p55
    %s57 = sadd.s32 %s17, 1
    %s58 = smul.u32 %s57, 3
    %s59 = sadd.s32 %s24, 1
    %s60 = smul.u32 %s59, 3
    %s61 = ssub.s32 %s16, %s28
    %s62 = ssub.s32 %s58, %s60
    %s63 = sor.u32 %s61, %s62
    %p64 = scmp.eq.s32.totalorder %s63, 0
    %s66 = sadd.s32 %s65, 1
    %s67 = scalar_select %p64, %s65, %s66
    %p70 = pneg %p64
    %p71 = scmp.eq.s32.totalorder %s9, 1
    %p72 = por %p70, %p71
    %p73 = scmp.ne.s32.totalorder %s65, %s68
    %p74 = scmp.eq.s32.totalorder %s9, 0
    %p75 = por %p73, %p74
    %p76 = scmp.ne.s32.totalorder %s65, %s68
    %p77 = scmp.eq.s32.totalorder %s14, 1
    %p78 = por %p76, %p77
    %p79 = scmp.ne.s32.totalorder %s68, %s69
    %p80 = scmp.eq.s32.totalorder %s14, 0
    %p81 = por %p79, %p80
    %p82 = scmp.ne.s32.totalorder %s68, %s69
    %p83 = scmp.eq.s32.totalorder %s15, 1
    %p84 = por %p82, %p83
    %p86 = scmp.ne.s32.totalorder %s69, %s85
    %p87 = scmp.eq.s32.totalorder %s15, 0
    %p88 = por %p86, %p87
    %s90 = sadd.s32 %s89, 1
    %p93 = scmp.eq.s32.totalorder %s9, 1
    %p94 = scmp.ne.s32.totalorder %s89, %s91
    %p95 = scmp.eq.s32.totalorder %s9, 0
    %p96 = por %p94, %p95
    %p97 = scmp.ne.s32.totalorder %s89, %s91
    %p98 = scmp.eq.s32.totalorder %s14, 1
    %p99 = por %p97, %p98
    %p100 = scmp.ne.s32.totalorder %s91, %s92
    %p101 = scmp.eq.s32.totalorder %s14, 0
    %p102 = por %p100, %p101
    %p103 = scmp.ne.s32.totalorder %s91, %s92
    %p104 = scmp.eq.s32.totalorder %s15, 1
    %p105 = por %p103, %p104
    %p107 = scmp.ne.s32.totalorder %s92, %s106
    %p108 = scmp.eq.s32.totalorder %s15, 0
    %p109 = por %p107, %p108
    %s110 = ssub.s32 %s16, %s28
    %p111 = scmp.eq.s32.totalorder %s110, 0
    %s113 = sadd.s32 %s112, 1
    %s114 = scalar_select %p111, %s112, %s113
    %p117 = pneg %p111
    %p118 = scmp.eq.s32.totalorder %s9, 1
    %p119 = por %p117, %p118
    %p120 = scmp.ne.s32.totalorder %s112, %s115
    %p121 = scmp.eq.s32.totalorder %s9, 0
    %p122 = por %p120, %p121
    %p123 = scmp.ne.s32.totalorder %s112, %s115
    %p124 = scmp.eq.s32.totalorder %s14, 1
    %p125 = por %p123, %p124
    %p126 = scmp.ne.s32.totalorder %s115, %s116
    %p127 = scmp.eq.s32.totalorder %s14, 0
    %p128 = por %p126, %p127
    %p129 = scmp.ne.s32.totalorder %s115, %s116
    %p130 = scmp.eq.s32.totalorder %s15, 1
    %p131 = por %p129, %p130
    %p133 = scmp.ne.s32.totalorder %s116, %s132
    %p134 = scmp.eq.s32.totalorder %s15, 0
    %p135 = por %p133, %p134
    %p136 = scmp.le.s32.totalorder 1, %s9
    %p137 = scmp.lt.s32.totalorder %s9, 3
    %p138 = pnand %p136, %p137
    %p139 = pneg %p138
    // Predicated region
    $region9: #{dnr_forward.2} parent=5 // pred_check
      _
    $region10: #{dnr_forward.2} parent=5 // pred_check_branch
      %141 = sbr.rel (%p138) target = $region12
    $region11: #{dnr_forward.2} parent=5 // pred_region
      %s142 = ssub.s32 %s9, 1
      // Predicated region
      $region13: #{dnr_forward.2} parent=11 // pred_check
        %p143 = pneg %p102
      $region14: #{dnr_forward.2} parent=11 // pred_check_branch
        %145 = sbr.rel (%p143) target = $region16
      $region15: #{dnr_forward.2} parent=11 // pred_region
        _
      $region16: #{dnr_forward.2} parent=11 // pred_fallthru
        _
    $region12: #{dnr_forward.2} parent=5 // pred_fallthru
      _
    %p146 = scmp.lt.s32.totalorder %s9, 2
    // Predicated region
    $region17: #{dnr_forward.2} parent=5 // pred_check
      %p147 = pneg %p146
    $region18: #{dnr_forward.2} parent=5 // pred_check_branch
      %149 = sbr.rel (%p147) target = $region20
    $region19: #{dnr_forward.2} parent=5 // pred_region
      // Predicated region
      $region21: #{dnr_forward.2} parent=19 // pred_check
        %p150 = pneg %p43
      $region22: #{dnr_forward.2} parent=19 // pred_check_branch
        %152 = sbr.rel (%p150) target = $region24
      $region23: #{dnr_forward.2} parent=19 // pred_region
        %s153 = smul.u32 3, %s17
        %s154 = ssub.s32 4, %s153
        %p155 = scmp.lt.s32.totalorder %s154, 3
        %s156 = scalar_select %p155, %s154, 3
        %s157 = smul.u32 32, %s156
        %p158 = scmp.lt.s32.totalorder %s16, 1
        %s159 = scalar_select %p158, %s16, 1
        %p160 = scmp.lt.s32.totalorder %s153, 3
        %s161 = scalar_select %p160, %s153, 3
        %s162 = smul.addr %s159, 4
        %s163 = sadd.s32 %s161, %s162
        %s164 = smul.addr %s163, 2
        %s165 = scalar_lea.vmem %s0, %s164
        %s166 = smul.u32 3, %s17
        %s167 = ssub.s32 4, %s166
        %p168 = scmp.lt.s32.totalorder %s167, 3
        %s169 = scalar_select %p168, %s167, 3
        %s170 = smul.u32 32, %s169
      $region24: #{dnr_forward.2} parent=19 // pred_fallthru
        _
      // Predicated region
      $region25: #{dnr_forward.2} parent=19 // pred_check
        %p171 = pneg %p75
      $region26: #{dnr_forward.2} parent=19 // pred_check_branch
        %173 = sbr.rel (%p171) target = $region28
      $region27: #{dnr_forward.2} parent=19 // pred_region
        %s174 = sadd.s32 %s17, 1
        %s175 = smul.u32 %s174, 3
        %p176 = scmp.lt.s32.totalorder %s16, 1
        %s177 = scalar_select %p176, %s16, 1
        %p178 = scmp.lt.s32.totalorder %s175, 3
        %s179 = scalar_select %p178, %s175, 3
        %s180 = smul.addr %s177, 4
        %s181 = sadd.s32 %s179, %s180
        %s182 = smul.addr %s181, 2
        %s183 = scalar_lea.vmem %s1, %s182
        %s184 = sadd.s32 %s17, 1
        %s185 = smul.u32 %s184, 3
      $region28: #{dnr_forward.2} parent=19 // pred_fallthru
        _
    $region20: #{dnr_forward.2} parent=5 // pred_fallthru
      _
    %p186 = scmp.le.s32.totalorder 1, %s9
    %p187 = scmp.lt.s32.totalorder %s9, 3
    %p188 = pnand %p186, %p187
    %p189 = pneg %p188
    // Predicated region
    $region29: #{dnr_forward.2} parent=5 // pred_check
      _
    $region30: #{dnr_forward.2} parent=5 // pred_check_branch
      %191 = sbr.rel (%p188) target = $region32
    $region31: #{dnr_forward.2} parent=5 // pred_region
      %s192 = ssub.s32 %s9, 1
      %s193 = smul.u32 3, %s19
      %s194 = ssub.s32 4, %s193
      %p195 = scmp.lt.s32.totalorder %s194, 3
      %s196 = scalar_select %p195, %s194, 3
      %s197 = smul.u32 32, %s196
      %p198 = scmp.lt.s32.totalorder %s18, 1
      %s199 = scalar_select %p198, %s18, 1
      %p200 = scmp.lt.s32.totalorder %s193, 3
      %s201 = scalar_select %p200, %s193, 3
      %s202 = smul.addr %s199, 4
      %s203 = sadd.s32 %s201, %s202
      %s204 = smul.addr %s203, 2
      %s205 = scalar_lea.vmem %s0, %s204
      %p206 = pneg %p49
      %p207 = pneg %p46
      %s208 = sadd.s32 %s19, 1
      %s209 = smul.u32 %s208, 3
      %p210 = scmp.lt.s32.totalorder %s18, 1
      %s211 = scalar_select %p210, %s18, 1
      %p212 = scmp.lt.s32.totalorder %s209, 3
      %s213 = scalar_select %p212, %s209, 3
      %s214 = smul.addr %s211, 4
      %s215 = sadd.s32 %s213, %s214
      %s216 = smul.addr %s215, 2
      %s217 = scalar_lea.vmem %s1, %s216
      %p218 = pneg %p81
      %p219 = pneg %p78
      %p220 = pneg %p102
      %p221 = pneg %p99
      %p222 = pneg %p128
      %p223 = pneg %p125
      %p224 = scmp.lt.s32.totalorder %s18, 1
      %s225 = scalar_select %p224, %s18, 1
      %s226 = smul.addr %s225, 8
      %s227 = scalar_lea.vmem %s3, %s226
      %s228 = smul.u32 3, %s19
      %s229 = ssub.s32 4, %s228
      %p230 = scmp.lt.s32.totalorder %s229, 3
      %s231 = scalar_select %p230, %s229, 3
      %s232 = smul.u32 32, %s231
      %p233 = scmp.lt.s32.totalorder %s18, 1
      %s234 = scalar_select %p233, %s18, 1
      %p235 = scmp.lt.s32.totalorder %s228, 3
      %s236 = scalar_select %p235, %s228, 3
      %s237 = smul.addr %s234, 4
      %s238 = sadd.s32 %s236, %s237
      %s239 = smul.addr %s238, 2
      %s240 = scalar_lea.vmem %s0, %s239
      %s241 = smul.u32 3, %s19
      %s242 = ssub.s32 4, %s241
      %p243 = scmp.lt.s32.totalorder %s242, 3
      %s244 = scalar_select %p243, %s242, 3
      %s245 = smul.u32 32, %s244
      %s246 = sadd.s32 %s19, 1
      %s247 = smul.u32 %s246, 3
      %p248 = scmp.lt.s32.totalorder %s18, 1
      %s249 = scalar_select %p248, %s18, 1
      %p250 = scmp.lt.s32.totalorder %s247, 3
      %s251 = scalar_select %p250, %s247, 3
      %s252 = smul.addr %s249, 4
      %s253 = sadd.s32 %s251, %s252
      %s254 = smul.addr %s253, 2
      %s255 = scalar_lea.vmem %s1, %s254
      %s256 = sadd.s32 %s19, 1
      %s257 = smul.u32 %s256, 3
      %p258 = scmp.lt.s32.totalorder %s18, 1
      %s259 = scalar_select %p258, %s18, 1
      %s260 = smul.addr %s259, 8
      %s261 = scalar_lea.vmem %s3, %s260
      %p263 = scmp.eq.s32.totalorder %s19, 0
      // Predicated region
      $region33: #{dnr_forward.2} parent=31 // pred_check
        %p264 = pneg %p263
      $region34: #{dnr_forward.2} parent=31 // pred_check_branch
        %266 = sbr.rel (%p264) target = $region36
      $region35: #{dnr_forward.2} parent=31 // pred_region
        %vm267 = vcmask 15360
        %268 = vst.msk [vmem:[%s261] sm:$0xff] %vm267, 0.0
      $region36: #{dnr_forward.2} parent=31 // pred_fallthru
        _
      %v269 = vld [vmem:[%s240] sm:$0x3f]
      %v270 = vld [vmem:[%s255] sm:$0x3]
      %v272 = vcombine.high %v269, %v269
      %v274 = vunpack.c.l.s4 1983009808
      %v275 = vunpack.c.0.s8 %v274
      %v276 = vlaneseq
      %v277 = vshrl.u32 %v276, 7
      %v278 = vsub.s32 %v275, %v277
      %v279 = vrot.slane %v269, %v278
      %v281 = vunpack.c.l.s4 1983009808
      %v282 = vunpack.c.0.s8 %v281
      %v283 = vlaneseq
      %v284 = vshrl.u32 %v283, 7
      %v285 = vsub.s32 %v282, %v284
      %v286 = vrot.slane %v272, %v285
      %v287 = vcombine.high %v279, %v279
      %v289 = vrot.slane %v279, 6
      %v290 = vrot.slane %v287, 6
      %v291 = vrot.slane %v286, 6
      %v292 = vrot.slane %v270, 6
      %293 = vrot.lane.b32.xlu0 %v289, 127
      %v294 = vpop.permute.xlu0 %293
      %295 = vrot.lane.b32.xlu0 %v290, 127
      %v296 = vpop.permute.xlu0 %295
      %297 = vrot.lane.b32.xlu0 %v291, 127
      %v298 = vpop.permute.xlu0 %297
      %299 = vrot.lane.b32.xlu0 %v292, 127
      %v300 = vpop.permute.xlu0 %299
      %vm301 = vcmask 1039360
      %v302 = vsel %vm301, %v294, %v296
      %v303 = vsel %vm301, %v296, %v298
      %v304 = vsel %vm301, %v298, %v300
      %v305 = vrot.slane %v279, 4
      %v306 = vrot.slane %v287, 4
      %v307 = vrot.slane %v286, 4
      %v308 = vrot.slane %v270, 4
      %309 = vrot.lane.b32.xlu0 %v305, 126
      %v310 = vpop.permute.xlu0 %309
      %311 = vrot.lane.b32.xlu0 %v306, 126
      %v312 = vpop.permute.xlu0 %311
      %313 = vrot.lane.b32.xlu0 %v307, 126
      %v314 = vpop.permute.xlu0 %313
      %315 = vrot.lane.b32.xlu0 %v308, 126
      %v316 = vpop.permute.xlu0 %315
      %vm317 = vcmask 1031168
      %v318 = vsel %vm317, %v310, %v312
      %v319 = vsel %vm317, %v312, %v314
      %v320 = vsel %vm317, %v314, %v316
      %v321 = vrot.slane %v279, 2
      %v322 = vrot.slane %v287, 2
      %v323 = vrot.slane %v286, 2
      %v324 = vrot.slane %v270, 2
      %325 = vrot.lane.b32.xlu0 %v321, 125
      %v326 = vpop.permute.xlu0 %325
      %327 = vrot.lane.b32.xlu0 %v322, 125
      %v328 = vpop.permute.xlu0 %327
      %329 = vrot.lane.b32.xlu0 %v323, 125
      %v330 = vpop.permute.xlu0 %329
      %331 = vrot.lane.b32.xlu0 %v324, 125
      %v332 = vpop.permute.xlu0 %331
      %vm333 = vcmask 1022976
      %v334 = vsel %vm333, %v326, %v328
      %v335 = vsel %vm333, %v328, %v330
      %v336 = vsel %vm333, %v330, %v332
      %337 = vrot.lane.b32.xlu0 %v279, 108
      %v338 = vpop.permute.xlu0 %337
      %339 = vrot.lane.b32.xlu0 %v287, 108
      %v340 = vpop.permute.xlu0 %339
      %341 = vrot.lane.b32.xlu0 %v286, 108
      %v342 = vpop.permute.xlu0 %341
      %343 = vrot.lane.b32.xlu0 %v270, 108
      %v344 = vpop.permute.xlu0 %343
      %vm345 = vcmask 883712
      %v346 = vsel %vm345, %v338, %v340
      %v347 = vsel %vm345, %v340, %v342
      %v348 = vsel %vm345, %v342, %v344
      %349 = vrot.lane.b32.xlu0 %v289, 107
      %v350 = vpop.permute.xlu0 %349
      %351 = vrot.lane.b32.xlu0 %v290, 107
      %v352 = vpop.permute.xlu0 %351
      %353 = vrot.lane.b32.xlu0 %v291, 107
      %v354 = vpop.permute.xlu0 %353
      %355 = vrot.lane.b32.xlu0 %v292, 107
      %v356 = vpop.permute.xlu0 %355
      %vm357 = vcmask 875520
      %v358 = vsel %vm357, %v350, %v352
      %v359 = vsel %vm357, %v352, %v354
      %v360 = vsel %vm357, %v354, %v356
      %361 = vrot.lane.b32.xlu0 %v305, 106
      %v362 = vpop.permute.xlu0 %361
      %363 = vrot.lane.b32.xlu0 %v306, 106
      %v364 = vpop.permute.xlu0 %363
      %365 = vrot.lane.b32.xlu0 %v307, 106
      %v366 = vpop.permute.xlu0 %365
      %367 = vrot.lane.b32.xlu0 %v308, 106
      %v368 = vpop.permute.xlu0 %367
      %vm369 = vcmask 867328
      %v370 = vsel %vm369, %v362, %v364
      %v371 = vsel %vm369, %v364, %v366
      %v372 = vsel %vm369, %v366, %v368
      %373 = vrot.lane.b32.xlu0 %v321, 105
      %v374 = vpop.permute.xlu0 %373
      %375 = vrot.lane.b32.xlu0 %v322, 105
      %v376 = vpop.permute.xlu0 %375
      %377 = vrot.lane.b32.xlu0 %v323, 105
      %v378 = vpop.permute.xlu0 %377
      %379 = vrot.lane.b32.xlu0 %v324, 105
      %v380 = vpop.permute.xlu0 %379
      %vm381 = vcmask 859136
      %v382 = vsel %vm381, %v374, %v376
      %v383 = vsel %vm381, %v376, %v378
      %v384 = vsel %vm381, %v378, %v380
      %385 = vrot.lane.b32.xlu0 %v279, 88
      %v386 = vpop.permute.xlu0 %385
      %387 = vrot.lane.b32.xlu0 %v287, 88
      %v388 = vpop.permute.xlu0 %387
      %389 = vrot.lane.b32.xlu0 %v286, 88
      %v390 = vpop.permute.xlu0 %389
      %391 = vrot.lane.b32.xlu0 %v270, 88
      %v392 = vpop.permute.xlu0 %391
      %vm393 = vcmask 719872
      %v394 = vsel %vm393, %v386, %v388
      %v395 = vsel %vm393, %v388, %v390
      %v396 = vsel %vm393, %v390, %v392
      %397 = vrot.lane.b32.xlu0 %v289, 87
      %v398 = vpop.permute.xlu0 %397
      %399 = vrot.lane.b32.xlu0 %v290, 87
      %v400 = vpop.permute.xlu0 %399
      %401 = vrot.lane.b32.xlu0 %v291, 87
      %v402 = vpop.permute.xlu0 %401
      %403 = vrot.lane.b32.xlu0 %v292, 87
      %v404 = vpop.permute.xlu0 %403
      %vm405 = vcmask 711680
      %v406 = vsel %vm405, %v398, %v400
      %v407 = vsel %vm405, %v400, %v402
      %v408 = vsel %vm405, %v402, %v404
      %409 = vrot.lane.b32.xlu0 %v305, 86
      %v410 = vpop.permute.xlu0 %409
      %411 = vrot.lane.b32.xlu0 %v306, 86
      %v412 = vpop.permute.xlu0 %411
      %413 = vrot.lane.b32.xlu0 %v307, 86
      %v414 = vpop.permute.xlu0 %413
      %415 = vrot.lane.b32.xlu0 %v308, 86
      %v416 = vpop.permute.xlu0 %415
      %vm417 = vcmask 703488
      %v418 = vsel %vm417, %v410, %v412
      %v419 = vsel %vm417, %v412, %v414
      %v420 = vsel %vm417, %v414, %v416
      %421 = vrot.lane.b32.xlu0 %v321, 85
      %v422 = vpop.permute.xlu0 %421
      %423 = vrot.lane.b32.xlu0 %v322, 85
      %v424 = vpop.permute.xlu0 %423
      %425 = vrot.lane.b32.xlu0 %v323, 85
      %v426 = vpop.permute.xlu0 %425
      %427 = vrot.lane.b32.xlu0 %v324, 85
      %v428 = vpop.permute.xlu0 %427
      %vm429 = vcmask 695296
      %v430 = vsel %vm429, %v422, %v424
      %v431 = vsel %vm429, %v424, %v426
      %v432 = vsel %vm429, %v426, %v428
      %433 = vrot.lane.b32.xlu0 %v279, 68
      %v434 = vpop.permute.xlu0 %433
      %435 = vrot.lane.b32.xlu0 %v287, 68
      %v436 = vpop.permute.xlu0 %435
      %437 = vrot.lane.b32.xlu0 %v286, 68
      %v438 = vpop.permute.xlu0 %437
      %439 = vrot.lane.b32.xlu0 %v270, 68
      %v440 = vpop.permute.xlu0 %439
      %vm441 = vcmask 556032
      %v442 = vsel %vm441, %v434, %v436
      %v443 = vsel %vm441, %v436, %v438
      %v444 = vsel %vm441, %v438, %v440
      %445 = vrot.lane.b32.xlu0 %v289, 67
      %v446 = vpop.permute.xlu0 %445
      %447 = vrot.lane.b32.xlu0 %v290, 67
      %v448 = vpop.permute.xlu0 %447
      %449 = vrot.lane.b32.xlu0 %v291, 67
      %v450 = vpop.permute.xlu0 %449
      %451 = vrot.lane.b32.xlu0 %v292, 67
      %v452 = vpop.permute.xlu0 %451
      %vm453 = vcmask 547840
      %v454 = vsel %vm453, %v446, %v448
      %v455 = vsel %vm453, %v448, %v450
      %v456 = vsel %vm453, %v450, %v452
      %457 = vrot.lane.b32.xlu0 %v305, 66
      %v458 = vpop.permute.xlu0 %457
      %459 = vrot.lane.b32.xlu0 %v306, 66
      %v460 = vpop.permute.xlu0 %459
      %461 = vrot.lane.b32.xlu0 %v307, 66
      %v462 = vpop.permute.xlu0 %461
      %463 = vrot.lane.b32.xlu0 %v308, 66
      %v464 = vpop.permute.xlu0 %463
      %vm465 = vcmask 539648
      %v466 = vsel %vm465, %v458, %v460
      %v467 = vsel %vm465, %v460, %v462
      %v468 = vsel %vm465, %v462, %v464
      %469 = vrot.lane.b32.xlu0 %v321, 65
      %v470 = vpop.permute.xlu0 %469
      %471 = vrot.lane.b32.xlu0 %v322, 65
      %v472 = vpop.permute.xlu0 %471
      %473 = vrot.lane.b32.xlu0 %v323, 65
      %v474 = vpop.permute.xlu0 %473
      %475 = vrot.lane.b32.xlu0 %v324, 65
      %v476 = vpop.permute.xlu0 %475
      %vm477 = vcmask 531456
      %v478 = vsel %vm477, %v470, %v472
      %v479 = vsel %vm477, %v472, %v474
      %v480 = vsel %vm477, %v474, %v476
      %vm481 = vcmask 1041408
      %v484 = vsel %vm481, %v279, %v302
      %v487 = vsel %vm481, %v287, %v303
      %v490 = vsel %vm481, %v286, %v304
      %vm491 = vcmask 1043456
      %v493 = vsel %vm491, %v484, %v318
      %v495 = vsel %vm491, %v487, %v319
      %v497 = vsel %vm491, %v490, %v320
      %vm498 = vcmask 1045504
      %v500 = vsel %vm498, %v493, %v334
      %v503 = vsel %vm498, %v495, %v335
      %v506 = vsel %vm498, %v497, %v336
      %v510 = vsel %vm481, %v346, %v358
      %v513 = vsel %vm481, %v347, %v359
      %v516 = vsel %vm481, %v348, %v360
      %v518 = vsel %vm491, %v510, %v370
      %v520 = vsel %vm491, %v513, %v371
      %v522 = vsel %vm491, %v516, %v372
      %v524 = vsel %vm498, %v518, %v382
      %v527 = vsel %vm498, %v520, %v383
      %v530 = vsel %vm498, %v522, %v384
      %v534 = vsel %vm481, %v394, %v406
      %v537 = vsel %vm481, %v395, %v407
      %v540 = vsel %vm481, %v396, %v408
      %v542 = vsel %vm491, %v534, %v418
      %v544 = vsel %vm491, %v537, %v419
      %v546 = vsel %vm491, %v540, %v420
      %v548 = vsel %vm498, %v542, %v430
      %v551 = vsel %vm498, %v544, %v431
      %v554 = vsel %vm498, %v546, %v432
      %v558 = vsel %vm481, %v442, %v454
      %v561 = vsel %vm481, %v443, %v455
      %v564 = vsel %vm481, %v444, %v456
      %v566 = vsel %vm491, %v558, %v466
      %v568 = vsel %vm491, %v561, %v467
      %v570 = vsel %vm491, %v564, %v468
      %v572 = vsel %vm498, %v566, %v478
      %v575 = vsel %vm498, %v568, %v479
      %v578 = vsel %vm498, %v570, %v480
      %v580 = vld [vmem:[%s2] sm:$0xf]
      %vm581 = vcmask 523264
      %v583 = vsel %vm581, %v580, 0
      %585 = vmatprep.subr.bf16.mxu0 %v503
      %586 = vmatpush1.bf16.msra.mxu0 %v500
      %587 = vmatprep.subr.bf16.mxu0 %v527
      %588 = vmatpush1.bf16.msra.mxu0 %v524
      %589 = vmatprep.subr.bf16.mxu0 %v551
      %590 = vmatpush1.bf16.msra.mxu0 %v548
      %591 = vmatprep.subr.bf16.mxu0 %v575
      %592 = vmatpush1.bf16.msra.mxu0 %v572
      %593 = vmatprep.subr.bf16.mxu0 0
      %594 = vmatpush1.bf16.msra.mxu0 0
      %595 = vmatprep.subr.bf16.mxu0 0
      %596 = vmatpush1.bf16.msra.mxu0 0
      %597 = vmatprep.subr.bf16.mxu0 0
      %598 = vmatpush1.bf16.msra.mxu0 0
      %599 = vmatprep.subr.bf16.mxu0 0
      %600 = vmatpush1.bf16.msra.mxu0 0
      %601 = vmatprep.subr.bf16.mxu0 0
      %602 = vmatpush1.bf16.msra.mxu0 0
      %603 = vmatprep.subr.bf16.mxu0 0
      %604 = vmatpush1.bf16.msra.mxu0 0
      %605 = vmatprep.subr.bf16.mxu0 0
      %606 = vmatpush1.bf16.msra.mxu0 0
      %607 = vmatprep.subr.bf16.mxu0 0
      %608 = vmatpush1.bf16.msra.mxu0 0
      %609 = vmatprep.subr.bf16.mxu0 0
      %610 = vmatpush1.bf16.msra.mxu0 0
      %611 = vmatprep.subr.bf16.mxu0 0
      %612 = vmatpush1.bf16.msra.mxu0 0
      %613 = vmatprep.subr.bf16.mxu0 0
      %614 = vmatpush1.bf16.msra.mxu0 0
      %615 = vmatprep.subr.bf16.mxu0 0
      %616 = vmatpush1.bf16.msra.mxu0 0
      %617 = vmatprep.mubr.bf16.mxu0 0
      %618 = vmatmul.mubr.bf16.gmra.mrb[0].mxu0 %v583
      %v619 = vpop.f32.mrb[0].mxu0
      %v620 = vadd.f32 0.0, %v619
      %v621 = vpop.f32.mrb[0].mxu0
      %v622 = vadd.f32 0.0, %v621
      %v623 = vpop.f32.mrb[0].mxu0
      %v624 = vpop.f32.mrb[0].mxu0
      %625 = vdwg.mxu0
      %626 = vmatprep.subr.bf16.mxu0 0
      %627 = vmatpush1.bf16.msra.mxu0 %v506
      %628 = vmatprep.subr.bf16.mxu0 0
      %629 = vmatpush1.bf16.msra.mxu0 %v530
      %630 = vmatprep.subr.bf16.mxu0 0
      %631 = vmatpush1.bf16.msra.mxu0 %v554
      %632 = vmatprep.subr.bf16.mxu0 0
      %633 = vmatpush1.bf16.msra.mxu0 %v578
      %634 = vmatprep.subr.bf16.mxu0 0
      %635 = vmatpush1.bf16.msra.mxu0 0
      %636 = vmatprep.subr.bf16.mxu0 0
      %637 = vmatpush1.bf16.msra.mxu0 0
      %638 = vmatprep.subr.bf16.mxu0 0
      %639 = vmatpush1.bf16.msra.mxu0 0
      %640 = vmatprep.subr.bf16.mxu0 0
      %641 = vmatpush1.bf16.msra.mxu0 0
      %642 = vmatprep.subr.bf16.mxu0 0
      %643 = vmatpush1.bf16.msra.mxu0 0
      %644 = vmatprep.subr.bf16.mxu0 0
      %645 = vmatpush1.bf16.msra.mxu0 0
      %646 = vmatprep.subr.bf16.mxu0 0
      %647 = vmatpush1.bf16.msra.mxu0 0
      %648 = vmatprep.subr.bf16.mxu0 0
      %649 = vmatpush1.bf16.msra.mxu0 0
      %650 = vmatprep.subr.bf16.mxu0 0
      %651 = vmatpush1.bf16.msra.mxu0 0
      %652 = vmatprep.subr.bf16.mxu0 0
      %653 = vmatpush1.bf16.msra.mxu0 0
      %654 = vmatprep.subr.bf16.mxu0 0
      %655 = vmatpush1.bf16.msra.mxu0 0
      %656 = vmatprep.subr.bf16.mxu0 0
      %657 = vmatpush1.bf16.msra.mxu0 0
      %658 = vmatprep.mubr.bf16.mxu0 0
      %659 = vmatmul.mubr.bf16.gmra.mrb[0].mxu0 %v583
      %v660 = vpop.f32.mrb[0].mxu0
      %v661 = vadd.f32 0.0, %v660
      %v662 = vpop.f32.mrb[0].mxu0
      %v663 = vpop.f32.mrb[0].mxu0
      %v664 = vpop.f32.mrb[0].mxu0
      %665 = vdwg.mxu0
      %v666 = vlaneseq
      %v667 = vand.u32 %v666, 127
      %v668 = vadd.s32 %v667, 128
      %v669 = vadd.s32 %v667, 256
      %s670 = smul.u32 %s19, 384
      %v671 = vstv %s670
      %v672 = vadd.s32 %v667, %v671
      %v673 = vadd.s32 %v668, %v671
      %v674 = vadd.s32 %v669, %v671
      %vm675 = vcmp.lt.s32.totalorder %v672, 340
      %vm676 = vcmp.lt.s32.totalorder %v673, 340
      %vm677 = vcmp.lt.s32.totalorder %v674, 340
      %vm678 = vcmp.lt.s32.totalorder %v672, 0
      %v679 = vsub.s32 0, %v672
      %v680 = vsel %vm678, %v679, %v672
      %v681 = vmul.u32.u64.compose %v680, 3435973837
      %v682 = vextract.low.u32 %v681
      %v683 = vextract.high.u32 %v681
      %v684 = vshrl.u32 %v683, 4
      %v685 = vmul.u32 %v684, 20
      %v686 = vsub.s32 %v680, %v685
      %v687 = vsub.s32 0, %v686
      %v688 = vsel %vm678, %v687, %v686
      %vm689 = vcmp.lt.s32.totalorder %v673, 0
      %v690 = vsub.s32 0, %v673
      %v691 = vsel %vm689, %v690, %v673
      %v692 = vmul.u32.u64.compose %v691, 3435973837
      %v693 = vextract.low.u32 %v692
      %v694 = vextract.high.u32 %v692
      %v695 = vshrl.u32 %v694, 4
      %v696 = vmul.u32 %v695, 20
      %v697 = vsub.s32 %v691, %v696
      %v698 = vsub.s32 0, %v697
      %v699 = vsel %vm689, %v698, %v697
      %vm700 = vcmp.lt.s32.totalorder %v674, 0
      %v701 = vsub.s32 0, %v674
      %v702 = vsel %vm700, %v701, %v674
      %v703 = vmul.u32.u64.compose %v702, 3435973837
      %v704 = vextract.low.u32 %v703
      %v705 = vextract.high.u32 %v703
      %v706 = vshrl.u32 %v705, 4
      %v707 = vmul.u32 %v706, 20
      %v708 = vsub.s32 %v702, %v707
      %v709 = vsub.s32 0, %v708
      %v710 = vsel %vm700, %v709, %v708
      %vm711 = vcmp.ne.s32.totalorder %v688, 0
      %vm712 = vcmp.ne.s32.totalorder %v699, 0
      %vm713 = vcmp.ne.s32.totalorder %v710, 0
      %vm714 = vcmp.lt.s32.totalorder %v688, 0
      %vm715 = vcmp.lt.s32.totalorder %v699, 0
      %vm716 = vcmp.lt.s32.totalorder %v710, 0
      %vm717 = vmand %vm714, %vm711
      %vm718 = vmand %vm715, %vm712
      %vm719 = vmand %vm716, %vm713
      %v720 = vadd.s32 %v688, 20
      %v721 = vadd.s32 %v699, 20
      %v722 = vadd.s32 %v710, 20
      %v723 = vsel %vm717, %v720, %v688
      %v724 = vsel %vm718, %v721, %v699
      %v725 = vsel %vm719, %v722, %v710
      %vm726 = vcmp.lt.s32.totalorder %v723, 17
      %vm727 = vcmp.lt.s32.totalorder %v724, 17
      %vm728 = vcmp.lt.s32.totalorder %v725, 17
      %vm729 = vmand %vm675, %vm726
      %vm730 = vmand %vm676, %vm727
      %vm731 = vmand %vm677, %vm728
      %v732 = vsel %vm729, 1, 0
      %v733 = vsel %vm730, 1, 0
      %v734 = vsel %vm731, 1, 0
      %v735 = vcvt.s32.f32 %v732
      %v736 = vcvt.s32.f32 %v733
      %v737 = vcvt.s32.f32 %v734
      %v738 = vmul.f32 %v620, %v735
      %v739 = vmul.f32 %v622, %v736
      %v740 = vmul.f32 %v661, %v737
      %v741 = vadd.f32 %v738, %v739
      %v742 = vadd.f32 %v741, %v740
      %743 = vadd.xlane.f32.xlu0 %v742
      %v744 = vpop.xlane.xlu0 %743
      %v745 = vmul.f32 %v738, %v620
      %v746 = vmul.f32 %v739, %v622
      %v747 = vmul.f32 %v740, %v661
      %v748 = vadd.f32 %v745, %v746
      %v749 = vadd.f32 %v748, %v747
      %750 = vadd.xlane.f32.xlu0 %v749
      %v751 = vpop.xlane.xlu0 %750
      %v752 = vld [vmem:[%s261] sm:$0xff]
      %vm753 = vcmask 7168
      %v754 = vsel %vm753, %v744, %v751
      %v755 = vadd.f32 %v752, %v754
      %vm756 = vcmask 15360
      %757 = vst.msk [vmem:[%s261] sm:$0xff] %vm756, %v755
      %p758 = scmp.lt.s32.totalorder %s18, 1
      %s759 = scalar_select %p758, %s18, 1
      %s760 = smul.addr %s759, 8
      %s761 = scalar_lea.vmem %s3, %s760
      // Predicated region
      $region37: #{dnr_forward.2} parent=31 // pred_check
        %p762 = pneg %p125
      $region38: #{dnr_forward.2} parent=31 // pred_check_branch
        %764 = sbr.rel (%p762) target = $region40
      $region39: #{dnr_forward.2} parent=31 // pred_region
        _
      $region40: #{dnr_forward.2} parent=31 // pred_fallthru
        _
    $region32: #{dnr_forward.2} parent=5 // pred_fallthru
      _
    %p765 = scmp.le.s32.totalorder 2, %s9
    // Predicated region
    $region41: #{dnr_forward.2} parent=5 // pred_check
      %p766 = pneg %p765
    $region42: #{dnr_forward.2} parent=5 // pred_check_branch
      %768 = sbr.rel (%p766) target = $region44
    $region43: #{dnr_forward.2} parent=5 // pred_region
      %s769 = ssub.s32 %s9, 2
      // Predicated region
      $region45: #{dnr_forward.2} parent=43 // pred_check
        %p770 = pneg %p131
      $region46: #{dnr_forward.2} parent=43 // pred_check_branch
        %772 = sbr.rel (%p770) target = $region48
      $region47: #{dnr_forward.2} parent=43 // pred_region
        %p773 = scmp.lt.s32.totalorder %s20, 1
        %s774 = scalar_select %p773, %s20, 1
        %s775 = smul.addr %s774, 8
        %s776 = scalar_lea.vmem %s3, %s775
      $region48: #{dnr_forward.2} parent=43 // pred_fallthru
        _
    $region44: #{dnr_forward.2} parent=5 // pred_fallthru
      _
  $region6: #{dnr_forward.2} parent=0 // loop_footer
    %s13 = sadd.s32 1, %s9
  $region7: #{dnr_forward.2} parent=0 // loop_footer_branch
    %8 = sbr.rel target = $region3
  $region8: #{dnr_forward.2} parent=0 // loop_exit
    _

</llo_original>
